<compile_context>
chip_gen: v6e
topology: v6e:2x2x1
jax: 0.10.0
libtpu: 0.0.40
codegen_flags: <defaults>
</compile_context>

<pallas_src>
import math
import functools

import jax
import jax.numpy as jnp
from jax.experimental import pallas as pl
from jax.experimental.pallas import tpu as pltpu

LN_EPS = 1e-12


def _layer_norm(x, gamma, beta, eps=LN_EPS):
    mean = jnp.mean(x, axis=-1, keepdims=True)
    var = jnp.mean((x - mean) ** 2, axis=-1, keepdims=True)
    return (x - mean) * jax.lax.rsqrt(var + eps) * gamma + beta


def _gelu_erf(x):
    # matches _gelu_python: x * 0.5 * (1 + erf(x / sqrt(2)))
    return x * 0.5 * (1.0 + jax.lax.erf(x / math.sqrt(2.0)))


def bert_layer_kernel(num_heads, head_dim, seq_tile,
                      x_ref, mask_ref,
                      wq_ref, bq_ref, wk_ref, bk_ref, wv_ref, bv_ref,
                      wo_ref, bo_ref, ln1g_ref, ln1b_ref,
                      wi_ref, bi_ref, wo2_ref, bo2_ref, ln2g_ref, ln2b_ref,
                      out_ref, k_scr, v_scr):
    sq = pl.program_id(1)
    S = x_ref.shape[1]
    H = x_ref.shape[2]
    nh, hd, tq = num_heads, head_dim, seq_tile

    # ---- K/V for the whole sequence: computed once per batch row ----------
    # (valid only because sq is the innermost, sequential grid axis)
    @pl.when(sq == 0)
    def _():
        xf = x_ref[0].astype(jnp.bfloat16)                           # (S, H)
        k = jnp.dot(xf, wk_ref[...],
                    preferred_element_type=jnp.float32) + bk_ref[...]
        v = jnp.dot(xf, wv_ref[...],
                    preferred_element_type=jnp.float32) + bv_ref[...]
        # one reshape + major-dim transpose per tensor (no per-head slicing)
        k_scr[...] = jnp.transpose(k.reshape(S, nh, hd), (1, 0, 2)).astype(jnp.bfloat16)
        v_scr[...] = jnp.transpose(v.reshape(S, nh, hd), (1, 0, 2)).astype(jnp.bfloat16)

    # ---- Query tile --------------------------------------------------------
    row0 = pl.multiple_of(sq * tq, tq)
    xq = x_ref[0, pl.ds(row0, tq), :]                                # (tq, H) bf16
    xq_b = xq.astype(jnp.bfloat16)
    xq_f = xq.astype(jnp.float32)                                    # residual in f32

    # wq / bq are pre-scaled by 1/sqrt(head_dim) in prepare_encoder_params.
    q = jnp.dot(xq_b, wq_ref[...],
                preferred_element_type=jnp.float32) + bq_ref[...]
    qh = jnp.transpose(q.reshape(tq, nh, hd), (1, 0, 2)).astype(jnp.bfloat16)  # (nh, tq, hd)

    mask = mask_ref[...]                                             # (1, 1, S), additive
    scores = jnp.einsum('hqd,hkd->hqk', qh, k_scr[...],
                        preferred_element_type=jnp.float32) + mask   # (nh, tq, S)

    # Deferred softmax normalization: P@V with unnormalized exp weights, then
    # divide the small (nh, tq, hd) context by the row-sum (exact divide).
    m = jnp.max(scores, axis=-1, keepdims=True)
    e = jnp.exp(scores - m)                                          # (nh, tq, S) f32
    denom = jnp.sum(e, axis=-1, keepdims=True)                       # (nh, tq, 1)
    ctx = jnp.einsum('hqk,hkd->hqd', e.astype(jnp.bfloat16), v_scr[...],
                     preferred_element_type=jnp.float32)             # (nh, tq, hd)
    ctx = ctx / denom
    ctx = jnp.transpose(ctx, (1, 0, 2)).reshape(tq, H)               # (tq, H)

    # BertSelfOutput: dense + residual + LayerNorm
    attn_out = jnp.dot(ctx.astype(jnp.bfloat16), wo_ref[...],
                       preferred_element_type=jnp.float32) + bo_ref[...]
    h1 = _layer_norm(attn_out + xq_f, ln1g_ref[...], ln1b_ref[...])

    # BertIntermediate (erf-gelu) + BertOutput: dense + residual + LayerNorm
    inter = _gelu_erf(jnp.dot(h1.astype(jnp.bfloat16), wi_ref[...],
                              preferred_element_type=jnp.float32) + bi_ref[...])
    ffn_out = jnp.dot(inter.astype(jnp.bfloat16), wo2_ref[...],
                      preferred_element_type=jnp.float32) + bo2_ref[...]
    h2 = _layer_norm(ffn_out + h1, ln2g_ref[...], ln2b_ref[...])

    out_ref[0] = h2.astype(out_ref.dtype)


_PARAM_ORDER = ("wq", "bq", "wk", "bk", "wv", "bv",
                "wo", "bo", "ln1g", "ln1b",
                "wi", "bi", "wo2", "bo2", "ln2g", "ln2b")


def _const_spec(p):
    # Weights / biases: whole array, constant block index -> single-buffered.
    n = p.ndim
    return pl.BlockSpec(p.shape, lambda b, sq, n=n: (0,) * n,
                        pipeline_mode=pl.Buffered(1))


@functools.lru_cache(maxsize=None)
def _vmem_config():
    """(capacity, limit) in bytes; limit leaves headroom for compiler scratch."""
    try:
        cap = int(pltpu.get_tpu_info().vmem_capacity_bytes)
    except Exception:
        cap = 64 * 1024 * 1024  # conservative: v7x per-TC VMEM
    limit = cap - max(8 * 1024 * 1024, cap // 8)   # v5e/v6e -> 112 MiB, v7x -> 56 MiB
    return cap, limit


def _default_seq_tile(S, vmem_capacity_bytes):
    """Full-sequence tiles on 128 MiB chips (v5e/v6e); 128 on v7x so the
    (nh, tq, S) f32 softmax temporaries stay within the 64 MiB/TC budget."""
    big_vmem = vmem_capacity_bytes >= 96 * 1024 * 1024
    cap = 512 if big_vmem else 128
    t = min(S, cap)
    while t > 8 and S % t != 0:
        t //= 2
    return t if (t > 0 and S % t == 0) else S


def _prepare_params(params, num_heads):
    """One-time transform: fold 1/sqrt(head_dim) into wq/bq, cast weights bf16."""
    H = params["wq"].shape[0]
    gamma = math.sqrt(H // num_heads)
    p = dict(params)
    p["wq"] = (params["wq"] / gamma).astype(jnp.bfloat16)
    p["bq"] = params["bq"] / gamma                     # bias stays f32
    for name in ("wk", "wv", "wo", "wi", "wo2"):
        p[name] = params[name].astype(jnp.bfloat16)
    return p


def prepare_encoder_params(layer_params, num_heads):
    """Call ONCE at model-load time (hoisted out of the forward path)."""
    return [_prepare_params(p, num_heads) for p in layer_params]


def bert_layer_pallas(x, attn_mask, prepared_params, num_heads, seq_tile=None):
    B, S, H = x.shape
    head_dim = H // num_heads
    vmem_cap, vmem_limit = _vmem_config()
    if seq_tile is None:
        seq_tile = _default_seq_tile(S, vmem_cap)
    assert S % seq_tile == 0
    nq = S // seq_tile

    param_list = [prepared_params[name] for name in _PARAM_ORDER]

    in_specs = [
        pl.BlockSpec((1, S, H), lambda b, sq: (b, 0, 0)),   # full-seq hidden states (bf16)
        pl.BlockSpec((1, 1, S), lambda b, sq: (b, 0, 0)),   # additive attention mask (f32)
    ] + [_const_spec(p) for p in param_list]

    kernel = functools.partial(bert_layer_kernel, num_heads, head_dim, seq_tile)
    return pl.pallas_call(
        kernel,
        out_shape=jax.ShapeDtypeStruct((B, S, H), x.dtype),
        grid_spec=pltpu.PrefetchScalarGridSpec(
            num_scalar_prefetch=0,
            grid=(B, nq),
            in_specs=in_specs,
            out_specs=pl.BlockSpec((1, seq_tile, H), lambda b, sq: (b, sq, 0)),
            # NOTE: K/V scratch correctness requires the sq axis to remain the
            # innermost, sequential ("arbitrary") grid axis (init at sq == 0).
            scratch_shapes=[
                pltpu.VMEM((num_heads, S, head_dim), jnp.bfloat16),  # K heads
                pltpu.VMEM((num_heads, S, head_dim), jnp.bfloat16),  # V heads
            ],
        ),
        compiler_params=pltpu.CompilerParams(
            dimension_semantics=("parallel", "arbitrary"),
            vmem_limit_bytes=vmem_limit,
        ),
    )(x, attn_mask, *param_list)


def bert_encoder_pallas(hidden_states, attn_mask, prepared_layer_params, num_heads):
    # BertEncoder.forward with output_hidden_states=False, output_attentions=False,
    # head_mask=None, encoder_history_states=None, pre_norm=False (inference).
    # Residual stream carried in bf16 between layers; final output cast back.
    out_dtype = hidden_states.dtype
    h = hidden_states.astype(jnp.bfloat16)
    for p in prepared_layer_params:
        h = bert_layer_pallas(h, attn_mask, p, num_heads)
    return (h.astype(out_dtype),)


# ----------------------- pure-JAX f32 reference (for checking) -------------------
def bert_layer_ref(x, attn_mask, p, num_heads):
    B, S, H = x.shape
    hd = H // num_heads
    gamma = math.sqrt(hd)

    def split_heads(t):  # (B,S,H) -> (B,nh,S,hd)
        return t.reshape(B, S, num_heads, hd).transpose(0, 2, 1, 3)

    q = split_heads(x @ p["wq"] + p["bq"][0])
    k = split_heads(x @ p["wk"] + p["bk"][0])
    v = split_heads(x @ p["wv"] + p["bv"][0])
    scores = jnp.einsum("bhqd,bhkd->bhqk", q / gamma, k) + attn_mask[:, :, None, :]
    probs = jax.nn.softmax(scores, axis=-1)
    ctx = jnp.einsum("bhqk,bhkd->bhqd", probs, v).transpose(0, 2, 1, 3).reshape(B, S, H)

    attn_out = ctx @ p["wo"] + p["bo"][0]
    h1 = _layer_norm(attn_out + x, p["ln1g"][0], p["ln1b"][0])
    inter = _gelu_erf(h1 @ p["wi"] + p["bi"][0])
    ffn = inter @ p["wo2"] + p["bo2"][0]
    return _layer_norm(ffn + h1, p["ln2g"][0], p["ln2b"][0])


def bert_encoder_ref(x, attn_mask, layer_params, num_heads):
    for p in layer_params:
        x = bert_layer_ref(x, attn_mask, p, num_heads)
    return (x,)


# ----------------------------- parameter init -----------------------------------
def init_layer_params(key, hidden, intermediate):
    ks = jax.random.split(key, 8)
    w = lambda k, shape: 0.02 * jax.random.normal(k, shape, jnp.float32)
    b = lambda k, n: 0.02 * jax.random.normal(k, (1, n), jnp.float32)
    # Linear weights stored pre-transposed: (in_features, out_features) so the
    # kernel computes x @ W + b (== PyTorch x @ W_torch.T + b).
    return {
        "wq": w(ks[0], (hidden, hidden)), "bq": b(ks[4], hidden),
        "wk": w(ks[1], (hidden, hidden)), "bk": b(ks[5], hidden),
        "wv": w(ks[2], (hidden, hidden)), "bv": b(ks[6], hidden),
        "wo": w(ks[3], (hidden, hidden)), "bo": b(ks[7], hidden),
        "ln1g": jnp.ones((1, hidden), jnp.float32),
        "ln1b": jnp.zeros((1, hidden), jnp.float32),
        "wi": w(jax.random.fold_in(key, 100), (hidden, intermediate)),
        "bi": 0.02 * jax.random.normal(jax.random.fold_in(key, 101), (1, intermediate), jnp.float32),
        "wo2": w(jax.random.fold_in(key, 102), (intermediate, hidden)),
        "bo2": 0.02 * jax.random.normal(jax.random.fold_in(key, 103), (1, hidden), jnp.float32),
        "ln2g": jnp.ones((1, hidden), jnp.float32),
        "ln2b": jnp.zeros((1, hidden), jnp.float32),
    }


if __name__ == "__main__":
    B, S, H = 2, 8, 32
    NUM_HEADS = 4
    INTERMEDIATE = 64
    NUM_LAYERS = 2

    key = jax.random.PRNGKey(0)
    k_x, k_p = jax.random.split(key)
    hidden_states = jax.random.normal(k_x, (B, S, H), jnp.float32)

    # Padding-style additive attention mask: last 2 tokens of batch 1 masked.
    valid = jnp.ones((B, S), jnp.float32).at[1, S - 2:].set(0.0)
    attn_mask = ((1.0 - valid) * -10000.0)[:, None, :]  # (B, 1, S)

    layer_keys = jax.random.split(k_p, NUM_LAYERS)
    layer_params = [init_layer_params(layer_keys[i], H, INTERMEDIATE)
                    for i in range(NUM_LAYERS)]

    # One-time parameter preparation (bf16 cast + query-scale fold), hoisted
    # out of the forward path per review.
    prepared = prepare_encoder_params(layer_params, NUM_HEADS)

    out = bert_encoder_pallas(hidden_states, attn_mask, prepared, NUM_HEADS)
    out = jax.block_until_ready(out)

    ref = bert_encoder_ref(hidden_states, attn_mask, layer_params, NUM_HEADS)
    assert out[0].shape == (B, S, H)
    # bf16 MXU operands + bf16 residual stream -> loosened tolerance vs f32 ref.
    assert jnp.allclose(out[0], ref[0], atol=3e-2, rtol=3e-2), "mismatch vs JAX reference"

    print("KERNEL_OK")
</pallas_src>

<mosaic_0001>
module attributes {stable_mosaic.version = 11 : i64} {
  func.func @bert_layer_kernel(%arg0: i32, %arg1: i32, %arg2: memref<1x8x32xbf16, #tpu.memory_space<vmem>>, %arg3: memref<1x1x8xf32, #tpu.memory_space<vmem>>, %arg4: memref<32x32xbf16, #tpu.memory_space<vmem>>, %arg5: memref<1x32xf32, #tpu.memory_space<vmem>>, %arg6: memref<32x32xbf16, #tpu.memory_space<vmem>>, %arg7: memref<1x32xf32, #tpu.memory_space<vmem>>, %arg8: memref<32x32xbf16, #tpu.memory_space<vmem>>, %arg9: memref<1x32xf32, #tpu.memory_space<vmem>>, %arg10: memref<32x32xbf16, #tpu.memory_space<vmem>>, %arg11: memref<1x32xf32, #tpu.memory_space<vmem>>, %arg12: memref<1x32xf32, #tpu.memory_space<vmem>>, %arg13: memref<1x32xf32, #tpu.memory_space<vmem>>, %arg14: memref<32x64xbf16, #tpu.memory_space<vmem>>, %arg15: memref<1x64xf32, #tpu.memory_space<vmem>>, %arg16: memref<64x32xbf16, #tpu.memory_space<vmem>>, %arg17: memref<1x32xf32, #tpu.memory_space<vmem>>, %arg18: memref<1x32xf32, #tpu.memory_space<vmem>>, %arg19: memref<1x32xf32, #tpu.memory_space<vmem>>, %arg20: memref<1x8x32xbf16, #tpu.memory_space<vmem>>, %arg21: memref<4x8x8xbf16, #tpu.memory_space<vmem>>, %arg22: memref<4x8x8xbf16, #tpu.memory_space<vmem>>) attributes {dimension_semantics = [#tpu.dimension_semantics<parallel>, #tpu.dimension_semantics<arbitrary>], iteration_bounds = array<i64: 2, 1>, scalar_prefetch = 0 : i64, scratch_operands = 2 : i64, tpu.core_type = #tpu.core_type<tc>, window_params = [{transform_indices = @transform_0, window_bounds = array<i64: 1, 8, 32>}, {transform_indices = @transform_1, window_bounds = array<i64: 1, 1, 8>}, {pipeline_mode = #tpu.pipeline_mode<synchronous>, transform_indices = @transform_2, window_bounds = array<i64: 32, 32>}, {pipeline_mode = #tpu.pipeline_mode<synchronous>, transform_indices = @transform_3, window_bounds = array<i64: 1, 32>}, {pipeline_mode = #tpu.pipeline_mode<synchronous>, transform_indices = @transform_4, window_bounds = array<i64: 32, 32>}, {pipeline_mode = #tpu.pipeline_mode<synchronous>, transform_indices = @transform_5, window_bounds = array<i64: 1, 32>}, {pipeline_mode = #tpu.pipeline_mode<synchronous>, transform_indices = @transform_6, window_bounds = array<i64: 32, 32>}, {pipeline_mode = #tpu.pipeline_mode<synchronous>, transform_indices = @transform_7, window_bounds = array<i64: 1, 32>}, {pipeline_mode = #tpu.pipeline_mode<synchronous>, transform_indices = @transform_8, window_bounds = array<i64: 32, 32>}, {pipeline_mode = #tpu.pipeline_mode<synchronous>, transform_indices = @transform_9, window_bounds = array<i64: 1, 32>}, {pipeline_mode = #tpu.pipeline_mode<synchronous>, transform_indices = @transform_10, window_bounds = array<i64: 1, 32>}, {pipeline_mode = #tpu.pipeline_mode<synchronous>, transform_indices = @transform_11, window_bounds = array<i64: 1, 32>}, {pipeline_mode = #tpu.pipeline_mode<synchronous>, transform_indices = @transform_12, window_bounds = array<i64: 32, 64>}, {pipeline_mode = #tpu.pipeline_mode<synchronous>, transform_indices = @transform_13, window_bounds = array<i64: 1, 64>}, {pipeline_mode = #tpu.pipeline_mode<synchronous>, transform_indices = @transform_14, window_bounds = array<i64: 64, 32>}, {pipeline_mode = #tpu.pipeline_mode<synchronous>, transform_indices = @transform_15, window_bounds = array<i64: 1, 32>}, {pipeline_mode = #tpu.pipeline_mode<synchronous>, transform_indices = @transform_16, window_bounds = array<i64: 1, 32>}, {pipeline_mode = #tpu.pipeline_mode<synchronous>, transform_indices = @transform_17, window_bounds = array<i64: 1, 32>}, {transform_indices = @transform_18, window_bounds = array<i64: 1, 8, 32>}]} {
    %c0_i32 = arith.constant 0 : i32
    %0 = arith.cmpi eq, %arg1, %c0_i32 : i32
    %1 = arith.extui %0 : i1 to i32
    %c0_i32_0 = arith.constant 0 : i32
    %2 = arith.cmpi ne, %1, %c0_i32_0 : i32
    scf.if %2 {
      %c0_58 = arith.constant 0 : index
      %c0_59 = arith.constant 0 : index
      %c0_60 = arith.constant 0 : index
      %116 = vector.load %arg2[%c0_58, %c0_59, %c0_60] : memref<1x8x32xbf16, #tpu.memory_space<vmem>>, vector<1x8x32xbf16>
      %117 = vector.shape_cast %116 : vector<1x8x32xbf16> to vector<8x32xbf16>
      %c0_61 = arith.constant 0 : index
      %c0_62 = arith.constant 0 : index
      %118 = vector.load %arg6[%c0_61, %c0_62] : memref<32x32xbf16, #tpu.memory_space<vmem>>, vector<32x32xbf16>
      %cst_63 = arith.constant dense<0.000000e+00> : vector<8x32xf32>
      %119 = tpu.matmul %117, %118, %cst_63 {dimension_numbers = #tpu.dot_dimension_numbers<[1], [0], [0], [1], [0, 0, 1, 1], [], []>} : vector<8x32xbf16>, vector<32x32xbf16>, vector<8x32xf32> -> vector<8x32xf32>
      %c0_64 = arith.constant 0 : index
      %c0_65 = arith.constant 0 : index
      %120 = vector.load %arg7[%c0_64, %c0_65] : memref<1x32xf32, #tpu.memory_space<vmem>>, vector<1x32xf32>
      %121 = vector.broadcast %120 : vector<1x32xf32> to vector<8x32xf32>
      %122 = arith.addf %119, %121 : vector<8x32xf32>
      %c0_66 = arith.constant 0 : index
      %c0_67 = arith.constant 0 : index
      %123 = vector.load %arg8[%c0_66, %c0_67] : memref<32x32xbf16, #tpu.memory_space<vmem>>, vector<32x32xbf16>
      %cst_68 = arith.constant dense<0.000000e+00> : vector<8x32xf32>
      %124 = tpu.matmul %117, %123, %cst_68 {dimension_numbers = #tpu.dot_dimension_numbers<[1], [0], [0], [1], [0, 0, 1, 1], [], []>} : vector<8x32xbf16>, vector<32x32xbf16>, vector<8x32xf32> -> vector<8x32xf32>
      %c0_69 = arith.constant 0 : index
      %c0_70 = arith.constant 0 : index
      %125 = vector.load %arg9[%c0_69, %c0_70] : memref<1x32xf32, #tpu.memory_space<vmem>>, vector<1x32xf32>
      %126 = vector.broadcast %125 : vector<1x32xf32> to vector<8x32xf32>
      %127 = arith.addf %124, %126 : vector<8x32xf32>
      %128 = vector.shape_cast %122 : vector<8x32xf32> to vector<8x4x8xf32>
      %129 = tpu.transpose %128, [1, 0, 2] : vector<8x4x8xf32> -> vector<4x8x8xf32>
      %130 = arith.truncf %129 : vector<4x8x8xf32> to vector<4x8x8xbf16>
      %c0_71 = arith.constant 0 : index
      %c0_72 = arith.constant 0 : index
      %c0_73 = arith.constant 0 : index
      %131 = vector.load %arg21[%c0_71, %c0_72, %c0_73] : memref<4x8x8xbf16, #tpu.memory_space<vmem>>, vector<4x8x8xbf16>
      tpu.vector_store %arg21[%c0_71, %c0_72, %c0_73], %130 {strides = array<i32>} : memref<4x8x8xbf16, #tpu.memory_space<vmem>>, vector<4x8x8xbf16>,
      %132 = vector.shape_cast %127 : vector<8x32xf32> to vector<8x4x8xf32>
      %133 = tpu.transpose %132, [1, 0, 2] : vector<8x4x8xf32> -> vector<4x8x8xf32>
      %134 = arith.truncf %133 : vector<4x8x8xf32> to vector<4x8x8xbf16>
      %c0_74 = arith.constant 0 : index
      %c0_75 = arith.constant 0 : index
      %c0_76 = arith.constant 0 : index
      %135 = vector.load %arg22[%c0_74, %c0_75, %c0_76] : memref<4x8x8xbf16, #tpu.memory_space<vmem>>, vector<4x8x8xbf16>
      tpu.vector_store %arg22[%c0_74, %c0_75, %c0_76], %134 {strides = array<i32>} : memref<4x8x8xbf16, #tpu.memory_space<vmem>>, vector<4x8x8xbf16>,
    } else {
    }
    %c8_i32 = arith.constant 8 : i32
    %3 = arith.muli %arg1, %c8_i32 : i32
    %4 = tpu.assume_multiple %3, 8 : i32
    %c0 = arith.constant 0 : index
    %5 = arith.index_cast %4 : i32 to index
    %c0_1 = arith.constant 0 : index
    %6 = vector.load %arg2[%c0, %5, %c0_1] : memref<1x8x32xbf16, #tpu.memory_space<vmem>>, vector<1x8x32xbf16>
    %7 = vector.shape_cast %6 : vector<1x8x32xbf16> to vector<8x32xbf16>
    %8 = arith.extf %7 : vector<8x32xbf16> to vector<8x32xf32>
    %c0_2 = arith.constant 0 : index
    %c0_3 = arith.constant 0 : index
    %9 = vector.load %arg4[%c0_2, %c0_3] : memref<32x32xbf16, #tpu.memory_space<vmem>>, vector<32x32xbf16>
    %cst = arith.constant dense<0.000000e+00> : vector<8x32xf32>
    %10 = tpu.matmul %7, %9, %cst {dimension_numbers = #tpu.dot_dimension_numbers<[1], [0], [0], [1], [0, 0, 1, 1], [], []>} : vector<8x32xbf16>, vector<32x32xbf16>, vector<8x32xf32> -> vector<8x32xf32>
    %c0_4 = arith.constant 0 : index
    %c0_5 = arith.constant 0 : index
    %11 = vector.load %arg5[%c0_4, %c0_5] : memref<1x32xf32, #tpu.memory_space<vmem>>, vector<1x32xf32>
    %12 = vector.broadcast %11 : vector<1x32xf32> to vector<8x32xf32>
    %13 = arith.addf %10, %12 : vector<8x32xf32>
    %14 = vector.shape_cast %13 : vector<8x32xf32> to vector<8x4x8xf32>
    %15 = tpu.transpose %14, [1, 0, 2] : vector<8x4x8xf32> -> vector<4x8x8xf32>
    %16 = arith.truncf %15 : vector<4x8x8xf32> to vector<4x8x8xbf16>
    %c0_6 = arith.constant 0 : index
    %c0_7 = arith.constant 0 : index
    %c0_8 = arith.constant 0 : index
    %17 = vector.load %arg3[%c0_6, %c0_7, %c0_8] : memref<1x1x8xf32, #tpu.memory_space<vmem>>, vector<1x1x8xf32>
    %c0_9 = arith.constant 0 : index
    %c0_10 = arith.constant 0 : index
    %c0_11 = arith.constant 0 : index
    %18 = vector.load %arg21[%c0_9, %c0_10, %c0_11] : memref<4x8x8xbf16, #tpu.memory_space<vmem>>, vector<4x8x8xbf16>
    "tpu.trace_start"() <{level = 10 : i32, message = "hqd,hkd->hqk"}> : () -> ()
    %cst_12 = arith.constant dense<0.000000e+00> : vector<4x8x8xf32>
    %19 = tpu.matmul %16, %18, %cst_12 {dimension_numbers = #tpu.dot_dimension_numbers<[2], [2], [1], [1], [0, 0, 0, 1, 1, 1], [0], [0]>} : vector<4x8x8xbf16>, vector<4x8x8xbf16>, vector<4x8x8xf32> -> vector<4x8x8xf32>
    "tpu.trace_stop"() : () -> ()
    %20 = vector.broadcast %17 : vector<1x1x8xf32> to vector<4x8x8xf32>
    %21 = arith.addf %19, %20 : vector<4x8x8xf32>
    %cst_13 = arith.constant dense<0xFF800000> : vector<4x8xf32>
    %22 = vector.multi_reduction <maximumf>, %21, %cst_13 [2] : vector<4x8x8xf32> to vector<4x8xf32>
    %23 = vector.shape_cast %22 : vector<4x8xf32> to vector<4x8x1xf32>
    %24 = vector.broadcast %23 : vector<4x8x1xf32> to vector<4x8x8xf32>
    %25 = arith.subf %21, %24 : vector<4x8x8xf32>
    %26 = math.exp %25 : vector<4x8x8xf32>
    %cst_14 = arith.constant dense<0.000000e+00> : vector<4x8xf32>
    %27 = vector.multi_reduction <add>, %26, %cst_14 [2] : vector<4x8x8xf32> to vector<4x8xf32>
    %28 = vector.shape_cast %27 : vector<4x8xf32> to vector<4x8x1xf32>
    %29 = arith.truncf %26 : vector<4x8x8xf32> to vector<4x8x8xbf16>
    %c0_15 = arith.constant 0 : index
    %c0_16 = arith.constant 0 : index
    %c0_17 = arith.constant 0 : index
    %30 = vector.load %arg22[%c0_15, %c0_16, %c0_17] : memref<4x8x8xbf16, #tpu.memory_space<vmem>>, vector<4x8x8xbf16>
    "tpu.trace_start"() <{level = 10 : i32, message = "hqk,hkd->hqd"}> : () -> ()
    %cst_18 = arith.constant dense<0.000000e+00> : vector<4x8x8xf32>
    %31 = tpu.matmul %29, %30, %cst_18 {dimension_numbers = #tpu.dot_dimension_numbers<[2], [1], [1], [2], [0, 0, 0, 1, 1, 2], [0], [0]>} : vector<4x8x8xbf16>, vector<4x8x8xbf16>, vector<4x8x8xf32> -> vector<4x8x8xf32>
    "tpu.trace_stop"() : () -> ()
    %32 = vector.broadcast %28 : vector<4x8x1xf32> to vector<4x8x8xf32>
    %33 = arith.divf %31, %32 : vector<4x8x8xf32>
    %34 = tpu.transpose %33, [1, 0, 2] : vector<4x8x8xf32> -> vector<8x4x8xf32>
    %35 = vector.shape_cast %34 : vector<8x4x8xf32> to vector<8x32xf32>
    %36 = arith.truncf %35 : vector<8x32xf32> to vector<8x32xbf16>
    %c0_19 = arith.constant 0 : index
    %c0_20 = arith.constant 0 : index
    %37 = vector.load %arg10[%c0_19, %c0_20] : memref<32x32xbf16, #tpu.memory_space<vmem>>, vector<32x32xbf16>
    %cst_21 = arith.constant dense<0.000000e+00> : vector<8x32xf32>
    %38 = tpu.matmul %36, %37, %cst_21 {dimension_numbers = #tpu.dot_dimension_numbers<[1], [0], [0], [1], [0, 0, 1, 1], [], []>} : vector<8x32xbf16>, vector<32x32xbf16>, vector<8x32xf32> -> vector<8x32xf32>
    %c0_22 = arith.constant 0 : index
    %c0_23 = arith.constant 0 : index
    %39 = vector.load %arg11[%c0_22, %c0_23] : memref<1x32xf32, #tpu.memory_space<vmem>>, vector<1x32xf32>
    %40 = vector.broadcast %39 : vector<1x32xf32> to vector<8x32xf32>
    %41 = arith.addf %38, %40 : vector<8x32xf32>
    %42 = arith.addf %41, %8 : vector<8x32xf32>
    %c0_24 = arith.constant 0 : index
    %c0_25 = arith.constant 0 : index
    %43 = vector.load %arg12[%c0_24, %c0_25] : memref<1x32xf32, #tpu.memory_space<vmem>>, vector<1x32xf32>
    %c0_26 = arith.constant 0 : index
    %c0_27 = arith.constant 0 : index
    %44 = vector.load %arg13[%c0_26, %c0_27] : memref<1x32xf32, #tpu.memory_space<vmem>>, vector<1x32xf32>
    %cst_28 = arith.constant dense<0.000000e+00> : vector<8xf32>
    %45 = vector.multi_reduction <add>, %42, %cst_28 [1] : vector<8x32xf32> to vector<8xf32>
    %46 = vector.shape_cast %45 : vector<8xf32> to vector<8x1xf32>
    %cst_29 = arith.constant 3.200000e+01 : f32
    %47 = vector.broadcast %cst_29 : f32 to vector<8x1xf32>
    %48 = arith.divf %46, %47 : vector<8x1xf32>
    %49 = vector.broadcast %48 : vector<8x1xf32> to vector<8x32xf32>
    %50 = arith.subf %42, %49 : vector<8x32xf32>
    %51 = arith.mulf %50, %50 : vector<8x32xf32>
    %cst_30 = arith.constant dense<0.000000e+00> : vector<8xf32>
    %52 = vector.multi_reduction <add>, %51, %cst_30 [1] : vector<8x32xf32> to vector<8xf32>
    %53 = vector.shape_cast %52 : vector<8xf32> to vector<8x1xf32>
    %cst_31 = arith.constant 3.200000e+01 : f32
    %54 = vector.broadcast %cst_31 : f32 to vector<8x1xf32>
    %55 = arith.divf %53, %54 : vector<8x1xf32>
    %56 = vector.broadcast %48 : vector<8x1xf32> to vector<8x32xf32>
    %57 = arith.subf %42, %56 : vector<8x32xf32>
    %cst_32 = arith.constant 9.99999996E-13 : f32
    %58 = vector.broadcast %cst_32 : f32 to vector<8x1xf32>
    %59 = arith.addf %55, %58 : vector<8x1xf32>
    %60 = math.rsqrt %59 : vector<8x1xf32>
    %61 = vector.broadcast %60 : vector<8x1xf32> to vector<8x32xf32>
    %62 = arith.mulf %57, %61 : vector<8x32xf32>
    %63 = vector.broadcast %43 : vector<1x32xf32> to vector<8x32xf32>
    %64 = arith.mulf %62, %63 : vector<8x32xf32>
    %65 = vector.broadcast %44 : vector<1x32xf32> to vector<8x32xf32>
    %66 = arith.addf %64, %65 : vector<8x32xf32>
    %67 = arith.truncf %66 : vector<8x32xf32> to vector<8x32xbf16>
    %c0_33 = arith.constant 0 : index
    %c0_34 = arith.constant 0 : index
    %68 = vector.load %arg14[%c0_33, %c0_34] : memref<32x64xbf16, #tpu.memory_space<vmem>>, vector<32x64xbf16>
    %cst_35 = arith.constant dense<0.000000e+00> : vector<8x64xf32>
    %69 = tpu.matmul %67, %68, %cst_35 {dimension_numbers = #tpu.dot_dimension_numbers<[1], [0], [0], [1], [0, 0, 1, 1], [], []>} : vector<8x32xbf16>, vector<32x64xbf16>, vector<8x64xf32> -> vector<8x64xf32>
    %c0_36 = arith.constant 0 : index
    %c0_37 = arith.constant 0 : index
    %70 = vector.load %arg15[%c0_36, %c0_37] : memref<1x64xf32, #tpu.memory_space<vmem>>, vector<1x64xf32>
    %71 = vector.broadcast %70 : vector<1x64xf32> to vector<8x64xf32>
    %72 = arith.addf %69, %71 : vector<8x64xf32>
    %cst_38 = arith.constant 5.000000e-01 : f32
    %73 = vector.broadcast %cst_38 : f32 to vector<8x64xf32>
    %74 = arith.mulf %72, %73 : vector<8x64xf32>
    %cst_39 = arith.constant 1.41421354 : f32
    %75 = vector.broadcast %cst_39 : f32 to vector<8x64xf32>
    %76 = arith.divf %72, %75 : vector<8x64xf32>
    %77 = math.erf %76 : vector<8x64xf32>
    %cst_40 = arith.constant 1.000000e+00 : f32
    %78 = vector.broadcast %cst_40 : f32 to vector<8x64xf32>
    %79 = arith.addf %78, %77 : vector<8x64xf32>
    %80 = arith.mulf %74, %79 : vector<8x64xf32>
    %81 = arith.truncf %80 : vector<8x64xf32> to vector<8x64xbf16>
    %c0_41 = arith.constant 0 : index
    %c0_42 = arith.constant 0 : index
    %82 = vector.load %arg16[%c0_41, %c0_42] : memref<64x32xbf16, #tpu.memory_space<vmem>>, vector<64x32xbf16>
    %cst_43 = arith.constant dense<0.000000e+00> : vector<8x32xf32>
    %83 = tpu.matmul %81, %82, %cst_43 {dimension_numbers = #tpu.dot_dimension_numbers<[1], [0], [0], [1], [0, 0, 1, 1], [], []>} : vector<8x64xbf16>, vector<64x32xbf16>, vector<8x32xf32> -> vector<8x32xf32>
    %c0_44 = arith.constant 0 : index
    %c0_45 = arith.constant 0 : index
    %84 = vector.load %arg17[%c0_44, %c0_45] : memref<1x32xf32, #tpu.memory_space<vmem>>, vector<1x32xf32>
    %85 = vector.broadcast %84 : vector<1x32xf32> to vector<8x32xf32>
    %86 = arith.addf %83, %85 : vector<8x32xf32>
    %87 = arith.addf %86, %66 : vector<8x32xf32>
    %c0_46 = arith.constant 0 : index
    %c0_47 = arith.constant 0 : index
    %88 = vector.load %arg18[%c0_46, %c0_47] : memref<1x32xf32, #tpu.memory_space<vmem>>, vector<1x32xf32>
    %c0_48 = arith.constant 0 : index
    %c0_49 = arith.constant 0 : index
    %89 = vector.load %arg19[%c0_48, %c0_49] : memref<1x32xf32, #tpu.memory_space<vmem>>, vector<1x32xf32>
    %cst_50 = arith.constant dense<0.000000e+00> : vector<8xf32>
    %90 = vector.multi_reduction <add>, %87, %cst_50 [1] : vector<8x32xf32> to vector<8xf32>
    %91 = vector.shape_cast %90 : vector<8xf32> to vector<8x1xf32>
    %cst_51 = arith.constant 3.200000e+01 : f32
    %92 = vector.broadcast %cst_51 : f32 to vector<8x1xf32>
    %93 = arith.divf %91, %92 : vector<8x1xf32>
    %94 = vector.broadcast %93 : vector<8x1xf32> to vector<8x32xf32>
    %95 = arith.subf %87, %94 : vector<8x32xf32>
    %96 = arith.mulf %95, %95 : vector<8x32xf32>
    %cst_52 = arith.constant dense<0.000000e+00> : vector<8xf32>
    %97 = vector.multi_reduction <add>, %96, %cst_52 [1] : vector<8x32xf32> to vector<8xf32>
    %98 = vector.shape_cast %97 : vector<8xf32> to vector<8x1xf32>
    %cst_53 = arith.constant 3.200000e+01 : f32
    %99 = vector.broadcast %cst_53 : f32 to vector<8x1xf32>
    %100 = arith.divf %98, %99 : vector<8x1xf32>
    %101 = vector.broadcast %93 : vector<8x1xf32> to vector<8x32xf32>
    %102 = arith.subf %87, %101 : vector<8x32xf32>
    %cst_54 = arith.constant 9.99999996E-13 : f32
    %103 = vector.broadcast %cst_54 : f32 to vector<8x1xf32>
    %104 = arith.addf %100, %103 : vector<8x1xf32>
    %105 = math.rsqrt %104 : vector<8x1xf32>
    %106 = vector.broadcast %105 : vector<8x1xf32> to vector<8x32xf32>
    %107 = arith.mulf %102, %106 : vector<8x32xf32>
    %108 = vector.broadcast %88 : vector<1x32xf32> to vector<8x32xf32>
    %109 = arith.mulf %107, %108 : vector<8x32xf32>
    %110 = vector.broadcast %89 : vector<1x32xf32> to vector<8x32xf32>
    %111 = arith.addf %109, %110 : vector<8x32xf32>
    %112 = arith.truncf %111 : vector<8x32xf32> to vector<8x32xbf16>
    %c0_55 = arith.constant 0 : index
    %c0_56 = arith.constant 0 : index
    %c0_57 = arith.constant 0 : index
    %113 = vector.load %arg20[%c0_55, %c0_56, %c0_57] : memref<1x8x32xbf16, #tpu.memory_space<vmem>>, vector<1x8x32xbf16>
    %114 = vector.shape_cast %113 : vector<1x8x32xbf16> to vector<8x32xbf16>
    %115 = vector.shape_cast %112 : vector<8x32xbf16> to vector<1x8x32xbf16>
    tpu.vector_store %arg20[%c0_55, %c0_56, %c0_57], %115 {strides = array<i32>} : memref<1x8x32xbf16, #tpu.memory_space<vmem>>, vector<1x8x32xbf16>,
    return
  }
  func.func @transform_0(%arg0: i32, %arg1: i32) -> (i32, i32, i32) {
    %c0_i32 = arith.constant 0 : i32
    %c0_i32_0 = arith.constant 0 : i32
    %c0_i32_1 = arith.constant 0 : i32
    return %arg0, %c0_i32, %c0_i32_0 : i32, i32, i32
  }
  func.func @transform_1(%arg0: i32, %arg1: i32) -> (i32, i32, i32) {
    %c0_i32 = arith.constant 0 : i32
    %c0_i32_0 = arith.constant 0 : i32
    %c0_i32_1 = arith.constant 0 : i32
    return %arg0, %c0_i32, %c0_i32_0 : i32, i32, i32
  }
  func.func @transform_2(%arg0: i32, %arg1: i32) -> (i32, i32) {
    %c0_i32 = arith.constant 0 : i32
    %c0_i32_0 = arith.constant 0 : i32
    %c0_i32_1 = arith.constant 0 : i32
    return %c0_i32, %c0_i32_0 : i32, i32
  }
  func.func @transform_3(%arg0: i32, %arg1: i32) -> (i32, i32) {
    %c0_i32 = arith.constant 0 : i32
    %c0_i32_0 = arith.constant 0 : i32
    %c0_i32_1 = arith.constant 0 : i32
    return %c0_i32, %c0_i32_0 : i32, i32
  }
  func.func @transform_4(%arg0: i32, %arg1: i32) -> (i32, i32) {
    %c0_i32 = arith.constant 0 : i32
    %c0_i32_0 = arith.constant 0 : i32
    %c0_i32_1 = arith.constant 0 : i32
    return %c0_i32, %c0_i32_0 : i32, i32
  }
  func.func @transform_5(%arg0: i32, %arg1: i32) -> (i32, i32) {
    %c0_i32 = arith.constant 0 : i32
    %c0_i32_0 = arith.constant 0 : i32
    %c0_i32_1 = arith.constant 0 : i32
    return %c0_i32, %c0_i32_0 : i32, i32
  }
  func.func @transform_6(%arg0: i32, %arg1: i32) -> (i32, i32) {
    %c0_i32 = arith.constant 0 : i32
    %c0_i32_0 = arith.constant 0 : i32
    %c0_i32_1 = arith.constant 0 : i32
    return %c0_i32, %c0_i32_0 : i32, i32
  }
  func.func @transform_7(%arg0: i32, %arg1: i32) -> (i32, i32) {
    %c0_i32 = arith.constant 0 : i32
    %c0_i32_0 = arith.constant 0 : i32
    %c0_i32_1 = arith.constant 0 : i32
    return %c0_i32, %c0_i32_0 : i32, i32
  }
  func.func @transform_8(%arg0: i32, %arg1: i32) -> (i32, i32) {
    %c0_i32 = arith.constant 0 : i32
    %c0_i32_0 = arith.constant 0 : i32
    %c0_i32_1 = arith.constant 0 : i32
    return %c0_i32, %c0_i32_0 : i32, i32
  }
  func.func @transform_9(%arg0: i32, %arg1: i32) -> (i32, i32) {
    %c0_i32 = arith.constant 0 : i32
    %c0_i32_0 = arith.constant 0 : i32
    %c0_i32_1 = arith.constant 0 : i32
    return %c0_i32, %c0_i32_0 : i32, i32
  }
  func.func @transform_10(%arg0: i32, %arg1: i32) -> (i32, i32) {
    %c0_i32 = arith.constant 0 : i32
    %c0_i32_0 = arith.constant 0 : i32
    %c0_i32_1 = arith.constant 0 : i32
    return %c0_i32, %c0_i32_0 : i32, i32
  }
  func.func @transform_11(%arg0: i32, %arg1: i32) -> (i32, i32) {
    %c0_i32 = arith.constant 0 : i32
    %c0_i32_0 = arith.constant 0 : i32
    %c0_i32_1 = arith.constant 0 : i32
    return %c0_i32, %c0_i32_0 : i32, i32
  }
  func.func @transform_12(%arg0: i32, %arg1: i32) -> (i32, i32) {
    %c0_i32 = arith.constant 0 : i32
    %c0_i32_0 = arith.constant 0 : i32
    %c0_i32_1 = arith.constant 0 : i32
    return %c0_i32, %c0_i32_0 : i32, i32
  }
  func.func @transform_13(%arg0: i32, %arg1: i32) -> (i32, i32) {
    %c0_i32 = arith.constant 0 : i32
    %c0_i32_0 = arith.constant 0 : i32
    %c0_i32_1 = arith.constant 0 : i32
    return %c0_i32, %c0_i32_0 : i32, i32
  }
  func.func @transform_14(%arg0: i32, %arg1: i32) -> (i32, i32) {
    %c0_i32 = arith.constant 0 : i32
    %c0_i32_0 = arith.constant 0 : i32
    %c0_i32_1 = arith.constant 0 : i32
    return %c0_i32, %c0_i32_0 : i32, i32
  }
  func.func @transform_15(%arg0: i32, %arg1: i32) -> (i32, i32) {
    %c0_i32 = arith.constant 0 : i32
    %c0_i32_0 = arith.constant 0 : i32
    %c0_i32_1 = arith.constant 0 : i32
    return %c0_i32, %c0_i32_0 : i32, i32
  }
  func.func @transform_16(%arg0: i32, %arg1: i32) -> (i32, i32) {
    %c0_i32 = arith.constant 0 : i32
    %c0_i32_0 = arith.constant 0 : i32
    %c0_i32_1 = arith.constant 0 : i32
    return %c0_i32, %c0_i32_0 : i32, i32
  }
  func.func @transform_17(%arg0: i32, %arg1: i32) -> (i32, i32) {
    %c0_i32 = arith.constant 0 : i32
    %c0_i32_0 = arith.constant 0 : i32
    %c0_i32_1 = arith.constant 0 : i32
    return %c0_i32, %c0_i32_0 : i32, i32
  }
  func.func @transform_18(%arg0: i32, %arg1: i32) -> (i32, i32, i32) {
    %c0_i32 = arith.constant 0 : i32
    %c0_i32_0 = arith.constant 0 : i32
    return %arg0, %arg1, %c0_i32 : i32, i32, i32
  }
}

</mosaic_0001>

<llo_original>
// kernel: tpu_custom_call.1
$region0: #{tpu_custom_call.1}
  #allocation0 [shape = 'u32[]', space=smem, size = 0x4, offset = 0x4, fixed_abs, tag = 'smem constant byte address 0x4 - core index']
  #allocation1 [shape = 'u32[144,128]{1,0:T(1,128)}', space=vmem, size = 0x12000, scoped, tag = 'internal scratch']
  #allocation2 [shape = 'bf16[4,8,8]{2,1,0:T(8,128)(2,1)}', space=vmem, size = 0x2000, scoped, tag = 'scratch operand']
  #allocation3 [shape = 'bf16[4,8,8]{2,1,0:T(8,128)(2,1)}', space=vmem, size = 0x2000, scoped, tag = 'scratch operand']
  %s0 = inlined_call_operand.hbm [shape: bf16[2,8,32], index: 0, kind: input, shape index: {}]
  %s1 = inlined_call_operand.hbm [shape: f32[2,1,8], index: 1, kind: input, shape index: {}]
  %s2 = inlined_call_operand.vmem [shape: bf16[32,32], index: 2, kind: input, shape index: {}]
  %s3 = inlined_call_operand.vmem [shape: f32[1,32], index: 3, kind: input, shape index: {}]
  %s4 = inlined_call_operand.vmem [shape: bf16[32,32], index: 4, kind: input, shape index: {}]
  %s5 = inlined_call_operand.vmem [shape: f32[1,32], index: 5, kind: input, shape index: {}]
  %s6 = inlined_call_operand.vmem [shape: bf16[32,32], index: 6, kind: input, shape index: {}]
  %s7 = inlined_call_operand.vmem [shape: f32[1,32], index: 7, kind: input, shape index: {}]
  %s8 = inlined_call_operand.hbm [shape: bf16[32,32], index: 8, kind: input, shape index: {}]
  %s9 = inlined_call_operand.vmem [shape: f32[1,32], index: 9, kind: input, shape index: {}]
  %s10 = inlined_call_operand.vmem [shape: f32[1,32], index: 10, kind: input, shape index: {}]
  %s11 = inlined_call_operand.vmem [shape: f32[1,32], index: 11, kind: input, shape index: {}]
  %s12 = inlined_call_operand.hbm [shape: bf16[32,64], index: 12, kind: input, shape index: {}]
  %s13 = inlined_call_operand.vmem [shape: f32[1,64], index: 13, kind: input, shape index: {}]
  %s14 = inlined_call_operand.vmem [shape: bf16[64,32], index: 14, kind: input, shape index: {}]
  %s15 = inlined_call_operand.vmem [shape: f32[1,32], index: 15, kind: input, shape index: {}]
  %s16 = inlined_call_operand.vmem [shape: f32[1,32], index: 16, kind: input, shape index: {}]
  %s17 = inlined_call_operand.vmem [shape: f32[1,32], index: 17, kind: input, shape index: {}]
  %s18 = inlined_call_operand.hbm [shape: bf16[2,8,32], index: 18, kind: output, shape index: {}]
  %s19 = sld [smem:[#allocation0]]
  $region125: #{tpu_custom_call.1} parent=0
    _
  %s21 = ssub.s32 1, %s19
  %s22 = scalar_select 0, %s21, %s19
  $region1: #{tpu_custom_call.1} parent=0
    #allocation4 [shape = 'u8[4096]{0}', space=vmem, size = 0x1000, scoped, tag = 'input window, operand 0']
    #allocation5 [shape = 's32[2]{0}', space=sflag, size = 0x8, scoped, tag = 'scoped memory for tpu_custom_call.1']
    #allocation6 [shape = 's32[2]{0}', space=sflag, size = 0x8, scoped, tag = 'scoped memory for tpu_custom_call.1']
    #allocation7 [shape = 'u8[1024]{0}', space=vmem, size = 0x400, scoped, tag = 'input window, operand 1']
    #allocation8 [shape = 's32[2]{0}', space=sflag, size = 0x8, scoped, tag = 'scoped memory for tpu_custom_call.1']
    #allocation9 [shape = 'u8[8192]{0}', space=vmem, size = 0x2000, scoped, tag = 'input window, operand 8, single buffered']
    #allocation10 [shape = 'u8[8192]{0}', space=vmem, size = 0x2000, scoped, tag = 'input window, operand 12, single buffered']
    #allocation11 [shape = 's32[1]{0}', space=sflag, size = 0x4, scoped, tag = 'scoped memory for tpu_custom_call.1']
    #allocation12 [shape = 'u8[4096]{0}', space=vmem, size = 0x1000, scoped, tag = 'output window, operand 0']
    %23 = vsyncpa [#allocation5], 0
    %s24 = scalar_lea.sflag [#allocation5], 1
    %25 = vsyncpa %s24, 0
    %26 = vsyncpa [#allocation8], 0
    %s27 = scalar_lea.sflag [#allocation8], 1
    %28 = vsyncpa %s27, 0
    %29 = vsyncpa [#allocation11], 0
    %30 = vsyncpa [#allocation6], 0
    %s31 = scalar_lea.sflag [#allocation6], 1
    %32 = vsyncpa %s31, 0
    loop: start=0, step=1, limit=4
    $region2: #{tpu_custom_call.1} parent=1 // loop_pre_header
      _
    $region3: #{tpu_custom_call.1} parent=1 // loop_header
      %s34 = sphi 0, %s38
      %p35 = scmp.ge.s32.totalorder %s34, 4
      %s41 = sphi 0, %s53
      %s42 = sphi 0, %s49
      %s43 = sphi 0, %s41
      %s44 = sphi 0, %s42
      %s45 = sphi 0, %s43
      %s46 = sphi 0, %s44
      %s56 = sphi 0, %s58
      %s59 = sphi 0, %s56
      %s60 = sphi 0, %s59
      %s76 = sphi 0, %s60
      %s82 = sphi 0, %s84
      %s85 = sphi 0, %s82
      %s86 = sphi 0, %s85
      %s102 = sphi 0, %s86
      %s106 = sphi 0, %s106
      %s108 = sphi 0, %s106
      %s109 = sphi 0, %s108
      %s123 = sphi 0, %s109
      %s127 = sphi 0, %s127
      %s129 = sphi 0, %s127
      %s130 = sphi 0, %s129
      %s144 = sphi 0, %s130
      %s148 = sphi 0, %s148
      %s150 = sphi 0, %s148
      %s151 = sphi 0, %s150
      %s165 = sphi 0, %s151
      %s169 = sphi 0, %s169
      %s171 = sphi 0, %s169
      %s172 = sphi 0, %s171
      %s186 = sphi 0, %s172
      %s190 = sphi 0, %s190
      %s192 = sphi 0, %s190
      %s193 = sphi 0, %s192
      %s207 = sphi 0, %s193
      %s211 = sphi 0, %s211
      %s213 = sphi 0, %s211
      %s214 = sphi 0, %s213
      %s228 = sphi 0, %s214
      %s232 = sphi 0, %s232
      %s234 = sphi 0, %s232
      %s235 = sphi 0, %s234
      %s249 = sphi 0, %s235
      %s253 = sphi 0, %s253
      %s255 = sphi 0, %s253
      %s256 = sphi 0, %s255
      %s270 = sphi 0, %s256
      %s274 = sphi 0, %s274
      %s276 = sphi 0, %s274
      %s277 = sphi 0, %s276
      %s291 = sphi 0, %s277
      %s295 = sphi 0, %s295
      %s297 = sphi 0, %s295
      %s298 = sphi 0, %s297
      %s312 = sphi 0, %s298
      %s316 = sphi 0, %s316
      %s318 = sphi 0, %s316
      %s319 = sphi 0, %s318
      %s333 = sphi 0, %s319
      %s337 = sphi 0, %s337
      %s339 = sphi 0, %s337
      %s340 = sphi 0, %s339
      %s354 = sphi 0, %s340
      %s358 = sphi 0, %s358
      %s360 = sphi 0, %s358
      %s361 = sphi 0, %s360
      %s375 = sphi 0, %s361
      %s379 = sphi 0, %s379
      %s381 = sphi 0, %s379
      %s382 = sphi 0, %s381
      %s396 = sphi 0, %s382
      %s400 = sphi 0, %s400
      %s402 = sphi 0, %s400
      %s403 = sphi 0, %s402
      %s417 = sphi 0, %s403
      %s421 = sphi 0, %s421
      %s423 = sphi 0, %s421
      %s424 = sphi 0, %s423
      %s438 = sphi 0, %s424
      %s446 = sphi 0, %s448
      %s449 = sphi 0, %s446
      %s450 = sphi 0, %s449
      %s466 = sphi 0, %s450
    $region4: #{tpu_custom_call.1} parent=1 // loop_header_branch
      %37 = sbr.rel (%p35) target = $region8
    $region5: #{tpu_custom_call.1} parent=1 // loop_body
      %s39 = ssub.s32 %s34, 1
      %s40 = ssub.s32 %s34, 2
      %s47 = sadd.s32 1, %s42
      %p48 = scmp.ge.s32.totalorder %s47, 1
      %s49 = scalar_select %p48, 0, %s47
      %s50 = sadd.s32 1, %s41
      %s51 = scalar_select %p48, %s50, %s41
      %p52 = scmp.ge.s32.totalorder %s51, 2
      %s53 = scalar_select %p52, 0, %s51
      %s54 = ssub.s32 %s41, %s53
      %p55 = scmp.eq.s32.totalorder %s54, 0
      %s57 = sadd.s32 %s56, 1
      %s58 = scalar_select %p55, %s56, %s57
      %p61 = pneg %p55
      %p62 = scmp.eq.s32.totalorder %s34, 1
      %p63 = por %p61, %p62
      %p64 = scmp.ne.s32.totalorder %s56, %s59
      %p65 = scmp.eq.s32.totalorder %s34, 0
      %p66 = por %p64, %p65
      %p67 = scmp.ne.s32.totalorder %s56, %s59
      %p68 = scmp.eq.s32.totalorder %s39, 1
      %p69 = por %p67, %p68
      %p70 = scmp.ne.s32.totalorder %s59, %s60
      %p71 = scmp.eq.s32.totalorder %s39, 0
      %p72 = por %p70, %p71
      %p73 = scmp.ne.s32.totalorder %s59, %s60
      %p74 = scmp.eq.s32.totalorder %s40, 1
      %p75 = por %p73, %p74
      %p77 = scmp.ne.s32.totalorder %s60, %s76
      %p78 = scmp.eq.s32.totalorder %s40, 0
      %p79 = por %p77, %p78
      %s80 = ssub.s32 %s41, %s53
      %p81 = scmp.eq.s32.totalorder %s80, 0
      %s83 = sadd.s32 %s82, 1
      %s84 = scalar_select %p81, %s82, %s83
      %p87 = pneg %p81
      %p88 = scmp.eq.s32.totalorder %s34, 1
      %p89 = por %p87, %p88
      %p90 = scmp.ne.s32.totalorder %s82, %s85
      %p91 = scmp.eq.s32.totalorder %s34, 0
      %p92 = por %p90, %p91
      %p93 = scmp.ne.s32.totalorder %s82, %s85
      %p94 = scmp.eq.s32.totalorder %s39, 1
      %p95 = por %p93, %p94
      %p96 = scmp.ne.s32.totalorder %s85, %s86
      %p97 = scmp.eq.s32.totalorder %s39, 0
      %p98 = por %p96, %p97
      %p99 = scmp.ne.s32.totalorder %s85, %s86
      %p100 = scmp.eq.s32.totalorder %s40, 1
      %p101 = por %p99, %p100
      %p103 = scmp.ne.s32.totalorder %s86, %s102
      %p104 = scmp.eq.s32.totalorder %s40, 0
      %p105 = por %p103, %p104
      %s107 = sadd.s32 %s106, 1
      %p110 = scmp.eq.s32.totalorder %s34, 1
      %p111 = scmp.ne.s32.totalorder %s106, %s108
      %p112 = scmp.eq.s32.totalorder %s34, 0
      %p113 = por %p111, %p112
      %p114 = scmp.ne.s32.totalorder %s106, %s108
      %p115 = scmp.eq.s32.totalorder %s39, 1
      %p116 = por %p114, %p115
      %p117 = scmp.ne.s32.totalorder %s108, %s109
      %p118 = scmp.eq.s32.totalorder %s39, 0
      %p119 = por %p117, %p118
      %p120 = scmp.ne.s32.totalorder %s108, %s109
      %p121 = scmp.eq.s32.totalorder %s40, 1
      %p122 = por %p120, %p121
      %p124 = scmp.ne.s32.totalorder %s109, %s123
      %p125 = scmp.eq.s32.totalorder %s40, 0
      %p126 = por %p124, %p125
      %s128 = sadd.s32 %s127, 1
      %p131 = scmp.eq.s32.totalorder %s34, 1
      %p132 = scmp.ne.s32.totalorder %s127, %s129
      %p133 = scmp.eq.s32.totalorder %s34, 0
      %p134 = por %p132, %p133
      %p135 = scmp.ne.s32.totalorder %s127, %s129
      %p136 = scmp.eq.s32.totalorder %s39, 1
      %p137 = por %p135, %p136
      %p138 = scmp.ne.s32.totalorder %s129, %s130
      %p139 = scmp.eq.s32.totalorder %s39, 0
      %p140 = por %p138, %p139
      %p141 = scmp.ne.s32.totalorder %s129, %s130
      %p142 = scmp.eq.s32.totalorder %s40, 1
      %p143 = por %p141, %p142
      %p145 = scmp.ne.s32.totalorder %s130, %s144
      %p146 = scmp.eq.s32.totalorder %s40, 0
      %p147 = por %p145, %p146
      %s149 = sadd.s32 %s148, 1
      %p152 = scmp.eq.s32.totalorder %s34, 1
      %p153 = scmp.ne.s32.totalorder %s148, %s150
      %p154 = scmp.eq.s32.totalorder %s34, 0
      %p155 = por %p153, %p154
      %p156 = scmp.ne.s32.totalorder %s148, %s150
      %p157 = scmp.eq.s32.totalorder %s39, 1
      %p158 = por %p156, %p157
      %p159 = scmp.ne.s32.totalorder %s150, %s151
      %p160 = scmp.eq.s32.totalorder %s39, 0
      %p161 = por %p159, %p160
      %p162 = scmp.ne.s32.totalorder %s150, %s151
      %p163 = scmp.eq.s32.totalorder %s40, 1
      %p164 = por %p162, %p163
      %p166 = scmp.ne.s32.totalorder %s151, %s165
      %p167 = scmp.eq.s32.totalorder %s40, 0
      %p168 = por %p166, %p167
      %s170 = sadd.s32 %s169, 1
      %p173 = scmp.eq.s32.totalorder %s34, 1
      %p174 = scmp.ne.s32.totalorder %s169, %s171
      %p175 = scmp.eq.s32.totalorder %s34, 0
      %p176 = por %p174, %p175
      %p177 = scmp.ne.s32.totalorder %s169, %s171
      %p178 = scmp.eq.s32.totalorder %s39, 1
      %p179 = por %p177, %p178
      %p180 = scmp.ne.s32.totalorder %s171, %s172
      %p181 = scmp.eq.s32.totalorder %s39, 0
      %p182 = por %p180, %p181
      %p183 = scmp.ne.s32.totalorder %s171, %s172
      %p184 = scmp.eq.s32.totalorder %s40, 1
      %p185 = por %p183, %p184
      %p187 = scmp.ne.s32.totalorder %s172, %s186
      %p188 = scmp.eq.s32.totalorder %s40, 0
      %p189 = por %p187, %p188
      %s191 = sadd.s32 %s190, 1
      %p194 = scmp.eq.s32.totalorder %s34, 1
      %p195 = scmp.ne.s32.totalorder %s190, %s192
      %p196 = scmp.eq.s32.totalorder %s34, 0
      %p197 = por %p195, %p196
      %p198 = scmp.ne.s32.totalorder %s190, %s192
      %p199 = scmp.eq.s32.totalorder %s39, 1
      %p200 = por %p198, %p199
      %p201 = scmp.ne.s32.totalorder %s192, %s193
      %p202 = scmp.eq.s32.totalorder %s39, 0
      %p203 = por %p201, %p202
      %p204 = scmp.ne.s32.totalorder %s192, %s193
      %p205 = scmp.eq.s32.totalorder %s40, 1
      %p206 = por %p204, %p205
      %p208 = scmp.ne.s32.totalorder %s193, %s207
      %p209 = scmp.eq.s32.totalorder %s40, 0
      %p210 = por %p208, %p209
      %s212 = sadd.s32 %s211, 1
      %p215 = scmp.eq.s32.totalorder %s34, 1
      %p216 = scmp.ne.s32.totalorder %s211, %s213
      %p217 = scmp.eq.s32.totalorder %s34, 0
      %p218 = por %p216, %p217
      %p219 = scmp.ne.s32.totalorder %s211, %s213
      %p220 = scmp.eq.s32.totalorder %s39, 1
      %p221 = por %p219, %p220
      %p222 = scmp.ne.s32.totalorder %s213, %s214
      %p223 = scmp.eq.s32.totalorder %s39, 0
      %p224 = por %p222, %p223
      %p225 = scmp.ne.s32.totalorder %s213, %s214
      %p226 = scmp.eq.s32.totalorder %s40, 1
      %p227 = por %p225, %p226
      %p229 = scmp.ne.s32.totalorder %s214, %s228
      %p230 = scmp.eq.s32.totalorder %s40, 0
      %p231 = por %p229, %p230
      %s233 = sadd.s32 %s232, 1
      %p236 = scmp.eq.s32.totalorder %s34, 1
      %p237 = scmp.ne.s32.totalorder %s232, %s234
      %p238 = scmp.eq.s32.totalorder %s34, 0
      %p239 = por %p237, %p238
      %p240 = scmp.ne.s32.totalorder %s232, %s234
      %p241 = scmp.eq.s32.totalorder %s39, 1
      %p242 = por %p240, %p241
      %p243 = scmp.ne.s32.totalorder %s234, %s235
      %p244 = scmp.eq.s32.totalorder %s39, 0
      %p245 = por %p243, %p244
      %p246 = scmp.ne.s32.totalorder %s234, %s235
      %p247 = scmp.eq.s32.totalorder %s40, 1
      %p248 = por %p246, %p247
      %p250 = scmp.ne.s32.totalorder %s235, %s249
      %p251 = scmp.eq.s32.totalorder %s40, 0
      %p252 = por %p250, %p251
      %s254 = sadd.s32 %s253, 1
      %p257 = scmp.eq.s32.totalorder %s34, 1
      %p258 = scmp.ne.s32.totalorder %s253, %s255
      %p259 = scmp.eq.s32.totalorder %s34, 0
      %p260 = por %p258, %p259
      %p261 = scmp.ne.s32.totalorder %s253, %s255
      %p262 = scmp.eq.s32.totalorder %s39, 1
      %p263 = por %p261, %p262
      %p264 = scmp.ne.s32.totalorder %s255, %s256
      %p265 = scmp.eq.s32.totalorder %s39, 0
      %p266 = por %p264, %p265
      %p267 = scmp.ne.s32.totalorder %s255, %s256
      %p268 = scmp.eq.s32.totalorder %s40, 1
      %p269 = por %p267, %p268
      %p271 = scmp.ne.s32.totalorder %s256, %s270
      %p272 = scmp.eq.s32.totalorder %s40, 0
      %p273 = por %p271, %p272
      %s275 = sadd.s32 %s274, 1
      %p278 = scmp.eq.s32.totalorder %s34, 1
      %p279 = scmp.ne.s32.totalorder %s274, %s276
      %p280 = scmp.eq.s32.totalorder %s34, 0
      %p281 = por %p279, %p280
      %p282 = scmp.ne.s32.totalorder %s274, %s276
      %p283 = scmp.eq.s32.totalorder %s39, 1
      %p284 = por %p282, %p283
      %p285 = scmp.ne.s32.totalorder %s276, %s277
      %p286 = scmp.eq.s32.totalorder %s39, 0
      %p287 = por %p285, %p286
      %p288 = scmp.ne.s32.totalorder %s276, %s277
      %p289 = scmp.eq.s32.totalorder %s40, 1
      %p290 = por %p288, %p289
      %p292 = scmp.ne.s32.totalorder %s277, %s291
      %p293 = scmp.eq.s32.totalorder %s40, 0
      %p294 = por %p292, %p293
      %s296 = sadd.s32 %s295, 1
      %p299 = scmp.eq.s32.totalorder %s34, 1
      %p300 = scmp.ne.s32.totalorder %s295, %s297
      %p301 = scmp.eq.s32.totalorder %s34, 0
      %p302 = por %p300, %p301
      %p303 = scmp.ne.s32.totalorder %s295, %s297
      %p304 = scmp.eq.s32.totalorder %s39, 1
      %p305 = por %p303, %p304
      %p306 = scmp.ne.s32.totalorder %s297, %s298
      %p307 = scmp.eq.s32.totalorder %s39, 0
      %p308 = por %p306, %p307
      %p309 = scmp.ne.s32.totalorder %s297, %s298
      %p310 = scmp.eq.s32.totalorder %s40, 1
      %p311 = por %p309, %p310
      %p313 = scmp.ne.s32.totalorder %s298, %s312
      %p314 = scmp.eq.s32.totalorder %s40, 0
      %p315 = por %p313, %p314
      %s317 = sadd.s32 %s316, 1
      %p320 = scmp.eq.s32.totalorder %s34, 1
      %p321 = scmp.ne.s32.totalorder %s316, %s318
      %p322 = scmp.eq.s32.totalorder %s34, 0
      %p323 = por %p321, %p322
      %p324 = scmp.ne.s32.totalorder %s316, %s318
      %p325 = scmp.eq.s32.totalorder %s39, 1
      %p326 = por %p324, %p325
      %p327 = scmp.ne.s32.totalorder %s318, %s319
      %p328 = scmp.eq.s32.totalorder %s39, 0
      %p329 = por %p327, %p328
      %p330 = scmp.ne.s32.totalorder %s318, %s319
      %p331 = scmp.eq.s32.totalorder %s40, 1
      %p332 = por %p330, %p331
      %p334 = scmp.ne.s32.totalorder %s319, %s333
      %p335 = scmp.eq.s32.totalorder %s40, 0
      %p336 = por %p334, %p335
      %s338 = sadd.s32 %s337, 1
      %p341 = scmp.eq.s32.totalorder %s34, 1
      %p342 = scmp.ne.s32.totalorder %s337, %s339
      %p343 = scmp.eq.s32.totalorder %s34, 0
      %p344 = por %p342, %p343
      %p345 = scmp.ne.s32.totalorder %s337, %s339
      %p346 = scmp.eq.s32.totalorder %s39, 1
      %p347 = por %p345, %p346
      %p348 = scmp.ne.s32.totalorder %s339, %s340
      %p349 = scmp.eq.s32.totalorder %s39, 0
      %p350 = por %p348, %p349
      %p351 = scmp.ne.s32.totalorder %s339, %s340
      %p352 = scmp.eq.s32.totalorder %s40, 1
      %p353 = por %p351, %p352
      %p355 = scmp.ne.s32.totalorder %s340, %s354
      %p356 = scmp.eq.s32.totalorder %s40, 0
      %p357 = por %p355, %p356
      %s359 = sadd.s32 %s358, 1
      %p362 = scmp.eq.s32.totalorder %s34, 1
      %p363 = scmp.ne.s32.totalorder %s358, %s360
      %p364 = scmp.eq.s32.totalorder %s34, 0
      %p365 = por %p363, %p364
      %p366 = scmp.ne.s32.totalorder %s358, %s360
      %p367 = scmp.eq.s32.totalorder %s39, 1
      %p368 = por %p366, %p367
      %p369 = scmp.ne.s32.totalorder %s360, %s361
      %p370 = scmp.eq.s32.totalorder %s39, 0
      %p371 = por %p369, %p370
      %p372 = scmp.ne.s32.totalorder %s360, %s361
      %p373 = scmp.eq.s32.totalorder %s40, 1
      %p374 = por %p372, %p373
      %p376 = scmp.ne.s32.totalorder %s361, %s375
      %p377 = scmp.eq.s32.totalorder %s40, 0
      %p378 = por %p376, %p377
      %s380 = sadd.s32 %s379, 1
      %p383 = scmp.eq.s32.totalorder %s34, 1
      %p384 = scmp.ne.s32.totalorder %s379, %s381
      %p385 = scmp.eq.s32.totalorder %s34, 0
      %p386 = por %p384, %p385
      %p387 = scmp.ne.s32.totalorder %s379, %s381
      %p388 = scmp.eq.s32.totalorder %s39, 1
      %p389 = por %p387, %p388
      %p390 = scmp.ne.s32.totalorder %s381, %s382
      %p391 = scmp.eq.s32.totalorder %s39, 0
      %p392 = por %p390, %p391
      %p393 = scmp.ne.s32.totalorder %s381, %s382
      %p394 = scmp.eq.s32.totalorder %s40, 1
      %p395 = por %p393, %p394
      %p397 = scmp.ne.s32.totalorder %s382, %s396
      %p398 = scmp.eq.s32.totalorder %s40, 0
      %p399 = por %p397, %p398
      %s401 = sadd.s32 %s400, 1
      %p404 = scmp.eq.s32.totalorder %s34, 1
      %p405 = scmp.ne.s32.totalorder %s400, %s402
      %p406 = scmp.eq.s32.totalorder %s34, 0
      %p407 = por %p405, %p406
      %p408 = scmp.ne.s32.totalorder %s400, %s402
      %p409 = scmp.eq.s32.totalorder %s39, 1
      %p410 = por %p408, %p409
      %p411 = scmp.ne.s32.totalorder %s402, %s403
      %p412 = scmp.eq.s32.totalorder %s39, 0
      %p413 = por %p411, %p412
      %p414 = scmp.ne.s32.totalorder %s402, %s403
      %p415 = scmp.eq.s32.totalorder %s40, 1
      %p416 = por %p414, %p415
      %p418 = scmp.ne.s32.totalorder %s403, %s417
      %p419 = scmp.eq.s32.totalorder %s40, 0
      %p420 = por %p418, %p419
      %s422 = sadd.s32 %s421, 1
      %p425 = scmp.eq.s32.totalorder %s34, 1
      %p426 = scmp.ne.s32.totalorder %s421, %s423
      %p427 = scmp.eq.s32.totalorder %s34, 0
      %p428 = por %p426, %p427
      %p429 = scmp.ne.s32.totalorder %s421, %s423
      %p430 = scmp.eq.s32.totalorder %s39, 1
      %p431 = por %p429, %p430
      %p432 = scmp.ne.s32.totalorder %s423, %s424
      %p433 = scmp.eq.s32.totalorder %s39, 0
      %p434 = por %p432, %p433
      %p435 = scmp.ne.s32.totalorder %s423, %s424
      %p436 = scmp.eq.s32.totalorder %s40, 1
      %p437 = por %p435, %p436
      %p439 = scmp.ne.s32.totalorder %s424, %s438
      %p440 = scmp.eq.s32.totalorder %s40, 0
      %p441 = por %p439, %p440
      %s442 = ssub.s32 %s41, %s53
      %s443 = ssub.s32 %s42, %s49
      %s444 = sor.u32 %s442, %s443
      %p445 = scmp.eq.s32.totalorder %s444, 0
      %s447 = sadd.s32 %s446, 1
      %s448 = scalar_select %p445, %s446, %s447
      %p451 = pneg %p445
      %p452 = scmp.eq.s32.totalorder %s34, 1
      %p453 = por %p451, %p452
      %p454 = scmp.ne.s32.totalorder %s446, %s449
      %p455 = scmp.eq.s32.totalorder %s34, 0
      %p456 = por %p454, %p455
      %p457 = scmp.ne.s32.totalorder %s446, %s449
      %p458 = scmp.eq.s32.totalorder %s39, 1
      %p459 = por %p457, %p458
      %p460 = scmp.ne.s32.totalorder %s449, %s450
      %p461 = scmp.eq.s32.totalorder %s39, 0
      %p462 = por %p460, %p461
      %p463 = scmp.ne.s32.totalorder %s449, %s450
      %p464 = scmp.eq.s32.totalorder %s40, 1
      %p465 = por %p463, %p464
      %p467 = scmp.ne.s32.totalorder %s450, %s466
      %p468 = scmp.eq.s32.totalorder %s40, 0
      %p469 = por %p467, %p468
      %p470 = scmp.le.s32.totalorder 1, %s34
      %p471 = scmp.lt.s32.totalorder %s34, 3
      %p472 = pnand %p470, %p471
      %p473 = pneg %p472
      // Predicated region
      $region9: #{tpu_custom_call.1} parent=5 // pred_check
        _
      $region10: #{tpu_custom_call.1} parent=5 // pred_check_branch
        %475 = sbr.rel (%p472) target = $region12
      $region11: #{tpu_custom_call.1} parent=5 // pred_region
        %s476 = ssub.s32 %s34, 1
        // Predicated region
        $region13: #{tpu_custom_call.1} parent=11 // pred_check
          %p477 = pneg %p119
        $region14: #{tpu_custom_call.1} parent=11 // pred_check_branch
          %479 = sbr.rel (%p477) target = $region16
        $region15: #{tpu_custom_call.1} parent=11 // pred_region
          _
        $region16: #{tpu_custom_call.1} parent=11 // pred_fallthru
          _
        // Predicated region
        $region17: #{tpu_custom_call.1} parent=11 // pred_check
          %p480 = pneg %p140
        $region18: #{tpu_custom_call.1} parent=11 // pred_check_branch
          %482 = sbr.rel (%p480) target = $region20
        $region19: #{tpu_custom_call.1} parent=11 // pred_region
          _
        $region20: #{tpu_custom_call.1} parent=11 // pred_fallthru
          _
        // Predicated region
        $region21: #{tpu_custom_call.1} parent=11 // pred_check
          %p483 = pneg %p161
        $region22: #{tpu_custom_call.1} parent=11 // pred_check_branch
          %485 = sbr.rel (%p483) target = $region24
        $region23: #{tpu_custom_call.1} parent=11 // pred_region
          _
        $region24: #{tpu_custom_call.1} parent=11 // pred_fallthru
          _
        // Predicated region
        $region25: #{tpu_custom_call.1} parent=11 // pred_check
          %p486 = pneg %p182
        $region26: #{tpu_custom_call.1} parent=11 // pred_check_branch
          %488 = sbr.rel (%p486) target = $region28
        $region27: #{tpu_custom_call.1} parent=11 // pred_region
          _
        $region28: #{tpu_custom_call.1} parent=11 // pred_fallthru
          _
        // Predicated region
        $region29: #{tpu_custom_call.1} parent=11 // pred_check
          %p489 = pneg %p203
        $region30: #{tpu_custom_call.1} parent=11 // pred_check_branch
          %491 = sbr.rel (%p489) target = $region32
        $region31: #{tpu_custom_call.1} parent=11 // pred_region
          _
        $region32: #{tpu_custom_call.1} parent=11 // pred_fallthru
          _
        // Predicated region
        $region33: #{tpu_custom_call.1} parent=11 // pred_check
          %p492 = pneg %p224
        $region34: #{tpu_custom_call.1} parent=11 // pred_check_branch
          %494 = sbr.rel (%p492) target = $region36
        $region35: #{tpu_custom_call.1} parent=11 // pred_region
          _
        $region36: #{tpu_custom_call.1} parent=11 // pred_fallthru
          _
        // Predicated region
        $region37: #{tpu_custom_call.1} parent=11 // pred_check
          %p495 = pneg %p245
        $region38: #{tpu_custom_call.1} parent=11 // pred_check_branch
          %497 = sbr.rel (%p495) target = $region40
        $region39: #{tpu_custom_call.1} parent=11 // pred_region
          %s499 = ssub.s32 256, 256
          %500 = vsyncadd [#allocation8], %s499
          %s501 = sshll.u32 [#allocation9], 4
          %s502 = int_to_ptr.vmem [resolvable:$true] %s501
          %507 = dma.hbm_to_vmem [thread:$0]  %s8, 256, %s502, [#allocation8], 64, 64, 4
        $region40: #{tpu_custom_call.1} parent=11 // pred_fallthru
          _
        // Predicated region
        $region41: #{tpu_custom_call.1} parent=11 // pred_check
          %p508 = pneg %p266
        $region42: #{tpu_custom_call.1} parent=11 // pred_check_branch
          %510 = sbr.rel (%p508) target = $region44
        $region43: #{tpu_custom_call.1} parent=11 // pred_region
          _
        $region44: #{tpu_custom_call.1} parent=11 // pred_fallthru
          _
        // Predicated region
        $region45: #{tpu_custom_call.1} parent=11 // pred_check
          %p511 = pneg %p287
        $region46: #{tpu_custom_call.1} parent=11 // pred_check_branch
          %513 = sbr.rel (%p511) target = $region48
        $region47: #{tpu_custom_call.1} parent=11 // pred_region
          _
        $region48: #{tpu_custom_call.1} parent=11 // pred_fallthru
          _
        // Predicated region
        $region49: #{tpu_custom_call.1} parent=11 // pred_check
          %p514 = pneg %p308
        $region50: #{tpu_custom_call.1} parent=11 // pred_check_branch
          %516 = sbr.rel (%p514) target = $region52
        $region51: #{tpu_custom_call.1} parent=11 // pred_region
          _
        $region52: #{tpu_custom_call.1} parent=11 // pred_fallthru
          _
        // Predicated region
        $region53: #{tpu_custom_call.1} parent=11 // pred_check
          %p517 = pneg %p329
        $region54: #{tpu_custom_call.1} parent=11 // pred_check_branch
          %519 = sbr.rel (%p517) target = $region56
        $region55: #{tpu_custom_call.1} parent=11 // pred_region
          %s521 = ssub.s32 256, 256
          %522 = vsyncadd [#allocation11], %s521
          %s523 = sshll.u32 [#allocation10], 4
          %s524 = int_to_ptr.vmem [resolvable:$true] %s523
          %529 = dma.hbm_to_vmem [thread:$0]  %s12, 256, %s524, [#allocation11], 64, 64, 4
        $region56: #{tpu_custom_call.1} parent=11 // pred_fallthru
          _
        // Predicated region
        $region57: #{tpu_custom_call.1} parent=11 // pred_check
          %p530 = pneg %p350
        $region58: #{tpu_custom_call.1} parent=11 // pred_check_branch
          %532 = sbr.rel (%p530) target = $region60
        $region59: #{tpu_custom_call.1} parent=11 // pred_region
          _
        $region60: #{tpu_custom_call.1} parent=11 // pred_fallthru
          _
        // Predicated region
        $region61: #{tpu_custom_call.1} parent=11 // pred_check
          %p533 = pneg %p371
        $region62: #{tpu_custom_call.1} parent=11 // pred_check_branch
          %535 = sbr.rel (%p533) target = $region64
        $region63: #{tpu_custom_call.1} parent=11 // pred_region
          _
        $region64: #{tpu_custom_call.1} parent=11 // pred_fallthru
          _
        // Predicated region
        $region65: #{tpu_custom_call.1} parent=11 // pred_check
          %p536 = pneg %p392
        $region66: #{tpu_custom_call.1} parent=11 // pred_check_branch
          %538 = sbr.rel (%p536) target = $region68
        $region67: #{tpu_custom_call.1} parent=11 // pred_region
          _
        $region68: #{tpu_custom_call.1} parent=11 // pred_fallthru
          _
        // Predicated region
        $region69: #{tpu_custom_call.1} parent=11 // pred_check
          %p539 = pneg %p413
        $region70: #{tpu_custom_call.1} parent=11 // pred_check_branch
          %541 = sbr.rel (%p539) target = $region72
        $region71: #{tpu_custom_call.1} parent=11 // pred_region
          _
        $region72: #{tpu_custom_call.1} parent=11 // pred_fallthru
          _
        // Predicated region
        $region73: #{tpu_custom_call.1} parent=11 // pred_check
          %p542 = pneg %p434
        $region74: #{tpu_custom_call.1} parent=11 // pred_check_branch
          %544 = sbr.rel (%p542) target = $region76
        $region75: #{tpu_custom_call.1} parent=11 // pred_region
          _
        $region76: #{tpu_custom_call.1} parent=11 // pred_fallthru
          _
      $region12: #{tpu_custom_call.1} parent=5 // pred_fallthru
        _
      %p545 = scmp.lt.s32.totalorder %s34, 2
      // Predicated region
      $region77: #{tpu_custom_call.1} parent=5 // pred_check
        %p546 = pneg %p545
      $region78: #{tpu_custom_call.1} parent=5 // pred_check_branch
        %548 = sbr.rel (%p546) target = $region80
      $region79: #{tpu_custom_call.1} parent=5 // pred_region
        // Predicated region
        $region81: #{tpu_custom_call.1} parent=79 // pred_check
          %p549 = pneg %p66
        $region82: #{tpu_custom_call.1} parent=79 // pred_check_branch
          %551 = sbr.rel (%p549) target = $region84
        $region83: #{tpu_custom_call.1} parent=79 // pred_region
          %s552 = sand.u32 %s56, 1
          %s553 = scalar_lea.sflag [#allocation5], %s552
          %s554 = sand.u32 %s56, 1
          %s555 = smul.addr %s554, 4
          %s556 = scalar_lea.vmem [#allocation4], %s555
          %s558 = ssub.s32 64, 64
          %559 = vsyncadd %s553, %s558
          %s560 = smul.addr %s41, 64
          %s561 = scalar_lea.hbm %s0, %s560
          %s563 = sshll.u32 %s556, 4
          %s564 = int_to_ptr.vmem [resolvable:$true] %s563
          %566 = dma.hbm_to_vmem [thread:$0]  %s561, 64, %s564, %s553
        $region84: #{tpu_custom_call.1} parent=79 // pred_fallthru
          _
        // Predicated region
        $region85: #{tpu_custom_call.1} parent=79 // pred_check
          %p567 = pneg %p92
        $region86: #{tpu_custom_call.1} parent=79 // pred_check_branch
          %569 = sbr.rel (%p567) target = $region88
        $region87: #{tpu_custom_call.1} parent=79 // pred_region
          %s570 = sand.u32 %s34, 1
          %s571 = scalar_lea.sflag [#allocation8], %s570
          %s572 = sand.u32 %s82, 1
          %s573 = scalar_lea.vmem [#allocation7], %s572
          %s575 = ssub.s32 16, 16
          %576 = vsyncadd %s571, %s575
          %s577 = smul.addr %s41, 16
          %s578 = scalar_lea.hbm %s1, %s577
          %s580 = sshll.u32 %s573, 4
          %s581 = int_to_ptr.vmem [resolvable:$true] %s580
          %583 = dma.hbm_to_vmem [thread:$0]  %s578, 16, %s581, %s571
        $region88: #{tpu_custom_call.1} parent=79 // pred_fallthru
          _
      $region80: #{tpu_custom_call.1} parent=5 // pred_fallthru
        _
      %p584 = scmp.le.s32.totalorder 1, %s34
      %p585 = scmp.lt.s32.totalorder %s34, 3
      %p586 = pnand %p584, %p585
      %p587 = pneg %p586
      // Predicated region
      $region89: #{tpu_custom_call.1} parent=5 // pred_check
        _
      $region90: #{tpu_custom_call.1} parent=5 // pred_check_branch
        %589 = sbr.rel (%p586) target = $region92
      $region91: #{tpu_custom_call.1} parent=5 // pred_region
        %s590 = ssub.s32 %s34, 1
        %s591 = sand.u32 %s59, 1
        %s592 = scalar_lea.sflag [#allocation5], %s591
        %s593 = sand.u32 %s59, 1
        %s594 = smul.addr %s593, 4
        %s595 = scalar_lea.vmem [#allocation4], %s594
        // Predicated region
        $region93: #{tpu_custom_call.1} parent=91 // pred_check
          %p596 = pneg %p72
        $region94: #{tpu_custom_call.1} parent=91 // pred_check_branch
          %598 = sbr.rel (%p596) target = $region96
        $region95: #{tpu_custom_call.1} parent=91 // pred_region
          %599 = dma.done %s592, 64
        $region96: #{tpu_custom_call.1} parent=91 // pred_fallthru
          _
        %s600 = sand.u32 %s39, 1
        %s601 = scalar_lea.sflag [#allocation8], %s600
        %s602 = sand.u32 %s85, 1
        %s603 = scalar_lea.vmem [#allocation7], %s602
        // Predicated region
        $region97: #{tpu_custom_call.1} parent=91 // pred_check
          %p604 = pneg %p98
        $region98: #{tpu_custom_call.1} parent=91 // pred_check_branch
          %606 = sbr.rel (%p604) target = $region100
        $region99: #{tpu_custom_call.1} parent=91 // pred_region
          %607 = dma.done %s601, 16
        $region100: #{tpu_custom_call.1} parent=91 // pred_fallthru
          _
        // Predicated region
        $region101: #{tpu_custom_call.1} parent=91 // pred_check
          %p608 = pneg %p245
        $region102: #{tpu_custom_call.1} parent=91 // pred_check_branch
          %610 = sbr.rel (%p608) target = $region104
        $region103: #{tpu_custom_call.1} parent=91 // pred_region
          %611 = dma.done [#allocation8], 256
        $region104: #{tpu_custom_call.1} parent=91 // pred_fallthru
          _
        // Predicated region
        $region105: #{tpu_custom_call.1} parent=91 // pred_check
          %p612 = pneg %p329
        $region106: #{tpu_custom_call.1} parent=91 // pred_check_branch
          %614 = sbr.rel (%p612) target = $region108
        $region107: #{tpu_custom_call.1} parent=91 // pred_region
          %615 = dma.done [#allocation11], 256
        $region108: #{tpu_custom_call.1} parent=91 // pred_fallthru
          _
        %s616 = sand.u32 %s59, 1
        %s617 = scalar_lea.sflag [#allocation5], %s616
        %s618 = sand.u32 %s59, 1
        %s619 = smul.addr %s618, 4
        %s620 = scalar_lea.vmem [#allocation4], %s619
        %p621 = pneg %p72
        %p622 = pneg %p69
        %s623 = sand.u32 %s39, 1
        %s624 = scalar_lea.sflag [#allocation8], %s623
        %s625 = sand.u32 %s85, 1
        %s626 = scalar_lea.vmem [#allocation7], %s625
        %p627 = pneg %p98
        %p628 = pneg %p95
        %p629 = pneg %p119
        %p630 = pneg %p116
        %p631 = pneg %p140
        %p632 = pneg %p137
        %p633 = pneg %p161
        %p634 = pneg %p158
        %p635 = pneg %p182
        %p636 = pneg %p179
        %p637 = pneg %p203
        %p638 = pneg %p200
        %p639 = pneg %p224
        %p640 = pneg %p221
        %p641 = pneg %p245
        %p642 = pneg %p242
        %p643 = pneg %p266
        %p644 = pneg %p263
        %p645 = pneg %p287
        %p646 = pneg %p284
        %p647 = pneg %p308
        %p648 = pneg %p305
        %p649 = pneg %p329
        %p650 = pneg %p326
        %p651 = pneg %p350
        %p652 = pneg %p347
        %p653 = pneg %p371
        %p654 = pneg %p368
        %p655 = pneg %p392
        %p656 = pneg %p389
        %p657 = pneg %p413
        %p658 = pneg %p410
        %p659 = pneg %p434
        %p660 = pneg %p431
        %p661 = pneg %p462
        %p662 = pneg %p459
        %s663 = sand.u32 %s449, 1
        %s664 = scalar_lea.sflag [#allocation6], %s663
        %s665 = sand.u32 %s449, 1
        %s666 = smul.addr %s665, 4
        %s667 = scalar_lea.vmem [#allocation12], %s666
        %p669 = scmp.eq.s32.totalorder %s44, 0
        // Predicated region
        $region109: #{tpu_custom_call.1} parent=91 // pred_check
          %p670 = pneg %p669
        $region110: #{tpu_custom_call.1} parent=91 // pred_check_branch
          %672 = sbr.rel (%p670) target = $region112
        $region111: #{tpu_custom_call.1} parent=91 // pred_region
          %v673 = vld [vmem:[%s595] sm:$0xf]
          %v674 = vld [vmem:[%s4] sm:$0xf]
          %v675 = vld [vmem:[%s4 + $0x4] sm:$0xf]
          %v676 = vld [vmem:[%s4 + $0x8] sm:$0xf]
          %v677 = vld [vmem:[%s4 + $0xc] sm:$0xf]
          %v678 = vld [vmem:[%s5] sm:$0x1]
          %v680 = vlaneseq
          %v681 = vshrl.u32 %v680, 7
          %v682 = vsub.s32 0, %v681
          %v683 = vrot.slane %v678, %v682
          %v689 = vunpack.c.l.b16 %v674
          %v690 = vunpack.c.l.b16 %v675
          %v691 = vunpack.c.l.b16 %v676
          %v692 = vunpack.c.l.b16 %v677
          %v693 = vpack.c.b16 %v690, %v689
          %v694 = vpack.c.b16 %v692, %v691
          %vm697 = vcmask 261120
          %v699 = vsel %vm697, %v673, 0
          %701 = vmatprep.subr.bf16.mxu0 0
          %702 = vmatpush1.bf16.msra.mxu0 0
          %703 = vmatprep.subr.bf16.mxu0 0
          %704 = vmatpush1.bf16.msra.mxu0 0
          %705 = vmatprep.subr.bf16.mxu0 0
          %706 = vmatpush1.bf16.msra.mxu0 0
          %707 = vmatprep.subr.bf16.mxu0 0
          %708 = vmatpush1.bf16.msra.mxu0 0
          %709 = vmatprep.subr.bf16.mxu0 0
          %710 = vmatpush1.bf16.msra.mxu0 0
          %711 = vmatprep.subr.bf16.mxu0 0
          %712 = vmatpush1.bf16.msra.mxu0 0
          %713 = vmatprep.subr.bf16.mxu0 0
          %714 = vmatpush1.bf16.msra.mxu0 %v694
          %715 = vmatprep.subr.bf16.mxu0 0
          %716 = vmatpush1.bf16.msra.mxu0 %v693
          %717 = vmatprep.subr.bf16.mxu0 0
          %718 = vmatpush2.bf16.msra.mxu0 0
          %719 = vmatprep.subr.bf16.mxu0 0
          %720 = vmatpush2.bf16.msra.mxu0 0
          %721 = vmatprep.subr.bf16.mxu0 0
          %722 = vmatpush2.bf16.msra.mxu0 0
          %723 = vmatprep.subr.bf16.mxu0 0
          %724 = vmatpush2.bf16.msra.mxu0 0
          %725 = vmatprep.subr.bf16.mxu0 0
          %726 = vmatpush2.bf16.msra.mxu0 0
          %727 = vmatprep.subr.bf16.mxu0 0
          %728 = vmatpush2.bf16.msra.mxu0 0
          %729 = vmatprep.subr.bf16.mxu0 0
          %730 = vmatpush2.bf16.msra.mxu0 0
          %731 = vmatprep.subr.bf16.mxu0 0
          %732 = vmatpush2.bf16.msra.mxu0 0
          %733 = vmatprep.mubr.bf16.mxu0 0
          %734 = vmatmul.mubr.bf16.gmra.mxu0 %v699
          %v735 = vpop.f32.mrf.mxu0
          %v736 = vadd.f32 %v683, %v735
          %v737 = vpop.f32.mrf.mxu0
          %v738 = vpop.f32.mrf.mxu0
          %v739 = vpop.f32.mrf.mxu0
          %740 = vdwg.mxu0
          %v741 = vld [vmem:[%s6] sm:$0xf]
          %v742 = vld [vmem:[%s6 + $0x4] sm:$0xf]
          %v743 = vld [vmem:[%s6 + $0x8] sm:$0xf]
          %v744 = vld [vmem:[%s6 + $0xc] sm:$0xf]
          %v745 = vld [vmem:[%s7] sm:$0x1]
          %v747 = vlaneseq
          %v748 = vshrl.u32 %v747, 7
          %v749 = vsub.s32 0, %v748
          %v750 = vrot.slane %v745, %v749
          %v756 = vunpack.c.l.b16 %v741
          %v757 = vunpack.c.l.b16 %v742
          %v758 = vunpack.c.l.b16 %v743
          %v759 = vunpack.c.l.b16 %v744
          %v760 = vpack.c.b16 %v757, %v756
          %v761 = vpack.c.b16 %v759, %v758
          %764 = vmatprep.subr.bf16.mxu0 0
          %765 = vmatpush1.bf16.msra.mxu0 0
          %766 = vmatprep.subr.bf16.mxu0 0
          %767 = vmatpush1.bf16.msra.mxu0 0
          %768 = vmatprep.subr.bf16.mxu0 0
          %769 = vmatpush1.bf16.msra.mxu0 0
          %770 = vmatprep.subr.bf16.mxu0 0
          %771 = vmatpush1.bf16.msra.mxu0 0
          %772 = vmatprep.subr.bf16.mxu0 0
          %773 = vmatpush1.bf16.msra.mxu0 0
          %774 = vmatprep.subr.bf16.mxu0 0
          %775 = vmatpush1.bf16.msra.mxu0 0
          %776 = vmatprep.subr.bf16.mxu0 0
          %777 = vmatpush1.bf16.msra.mxu0 %v761
          %778 = vmatprep.subr.bf16.mxu0 0
          %779 = vmatpush1.bf16.msra.mxu0 %v760
          %780 = vmatprep.subr.bf16.mxu0 0
          %781 = vmatpush2.bf16.msra.mxu0 0
          %782 = vmatprep.subr.bf16.mxu0 0
          %783 = vmatpush2.bf16.msra.mxu0 0
          %784 = vmatprep.subr.bf16.mxu0 0
          %785 = vmatpush2.bf16.msra.mxu0 0
          %786 = vmatprep.subr.bf16.mxu0 0
          %787 = vmatpush2.bf16.msra.mxu0 0
          %788 = vmatprep.subr.bf16.mxu0 0
          %789 = vmatpush2.bf16.msra.mxu0 0
          %790 = vmatprep.subr.bf16.mxu0 0
          %791 = vmatpush2.bf16.msra.mxu0 0
          %792 = vmatprep.subr.bf16.mxu0 0
          %793 = vmatpush2.bf16.msra.mxu0 0
          %794 = vmatprep.subr.bf16.mxu0 0
          %795 = vmatpush2.bf16.msra.mxu0 0
          %796 = vmatprep.mubr.bf16.mxu0 0
          %797 = vmatmul.mubr.bf16.gmra.mxu0 %v699
          %v798 = vpop.f32.mrf.mxu0
          %v799 = vadd.f32 %v750, %v798
          %v800 = vpop.f32.mrf.mxu0
          %v801 = vpop.f32.mrf.mxu0
          %v802 = vpop.f32.mrf.mxu0
          %803 = vdwg.mxu0
          %805 = vrot.lane.b32.xlu0 %v736, 120
          %v806 = vpop.permute.xlu0 %805
          %808 = vrot.lane.b32.xlu0 %v736, 112
          %v809 = vpop.permute.xlu0 %808
          %811 = vrot.lane.b32.xlu0 %v736, 104
          %v812 = vpop.permute.xlu0 %811
          %v814 = vcombine.low %v736, %v809
          %v815 = vcombine.high %v736, %v809
          %v817 = vunpack.c.l.s4 1983009808
          %v818 = vunpack.c.0.s8 %v817
          %v819 = vlaneseq
          %v820 = vshrl.u32 %v819, 7
          %v821 = vsub.s32 %v818, %v820
          %v822 = vrot.slane %v814, %v821
          %v824 = vunpack.c.l.s4 1983009808
          %v825 = vunpack.c.0.s8 %v824
          %v826 = vlaneseq
          %v827 = vshrl.u32 %v826, 7
          %v828 = vsub.s32 %v825, %v827
          %v829 = vrot.slane %v815, %v828
          %v830 = vcombine.low %v806, %v812
          %v831 = vcombine.high %v806, %v812
          %v833 = vunpack.c.l.s4 1983009808
          %v834 = vunpack.c.0.s8 %v833
          %v835 = vlaneseq
          %v836 = vshrl.u32 %v835, 7
          %v837 = vsub.s32 %v834, %v836
          %v838 = vrot.slane %v830, %v837
          %v840 = vunpack.c.l.s4 1983009808
          %v841 = vunpack.c.0.s8 %v840
          %v842 = vlaneseq
          %v843 = vshrl.u32 %v842, 7
          %v844 = vsub.s32 %v841, %v843
          %v845 = vrot.slane %v831, %v844
          %v846 = vcombine.low %v822, %v838
          %v847 = vcombine.high %v822, %v838
          %v849 = vunpack.c.l.s4 1934713408
          %v850 = vunpack.c.0.s8 %v849
          %v851 = vlaneseq
          %v852 = vshrl.u32 %v851, 7
          %v853 = vsub.s32 %v850, %v852
          %v854 = vrot.slane %v846, %v853
          %v856 = vunpack.c.l.s4 1934713408
          %v857 = vunpack.c.0.s8 %v856
          %v858 = vlaneseq
          %v859 = vshrl.u32 %v858, 7
          %v860 = vsub.s32 %v857, %v859
          %v861 = vrot.slane %v847, %v860
          %v862 = vcombine.low %v829, %v845
          %v863 = vcombine.high %v829, %v845
          %v865 = vunpack.c.l.s4 1934713408
          %v866 = vunpack.c.0.s8 %v865
          %v867 = vlaneseq
          %v868 = vshrl.u32 %v867, 7
          %v869 = vsub.s32 %v866, %v868
          %v870 = vrot.slane %v862, %v869
          %v872 = vunpack.c.l.s4 1934713408
          %v873 = vunpack.c.0.s8 %v872
          %v874 = vlaneseq
          %v875 = vshrl.u32 %v874, 7
          %v876 = vsub.s32 %v873, %v875
          %v877 = vrot.slane %v863, %v876
          %v878 = vcombine.high %v854, 0.0
          %v879 = vcombine.high %v861, 0.0
          %v880 = vcombine.high %v870, 0.0
          %v881 = vcombine.high %v877, 0.0
          %v882 = vcombine.low %v854, %v861
          %v884 = vunpack.c.l.s4 1983009808
          %v885 = vunpack.c.0.s8 %v884
          %v886 = vlaneseq
          %v887 = vshrl.u32 %v886, 7
          %v888 = vsub.s32 %v885, %v887
          %v889 = vrot.slane %v882, %v888
          %v890 = vcombine.low %v878, %v879
          %v892 = vunpack.c.l.s4 1983009808
          %v893 = vunpack.c.0.s8 %v892
          %v894 = vlaneseq
          %v895 = vshrl.u32 %v894, 7
          %v896 = vsub.s32 %v893, %v895
          %v897 = vrot.slane %v890, %v896
          %v898 = vcombine.low %v870, %v877
          %v900 = vunpack.c.l.s4 1983009808
          %v901 = vunpack.c.0.s8 %v900
          %v902 = vlaneseq
          %v903 = vshrl.u32 %v902, 7
          %v904 = vsub.s32 %v901, %v903
          %v905 = vrot.slane %v898, %v904
          %v906 = vcombine.low %v880, %v881
          %v908 = vunpack.c.l.s4 1983009808
          %v909 = vunpack.c.0.s8 %v908
          %v910 = vlaneseq
          %v911 = vshrl.u32 %v910, 7
          %v912 = vsub.s32 %v909, %v911
          %v913 = vrot.slane %v906, %v912
          %v914 = vcombine.low %v889, %v897
          %v915 = vcombine.high %v889, %v897
          %v917 = vunpack.c.l.s4 1934713408
          %v918 = vunpack.c.0.s8 %v917
          %v919 = vlaneseq
          %v920 = vshrl.u32 %v919, 7
          %v921 = vsub.s32 %v918, %v920
          %v922 = vrot.slane %v914, %v921
          %v924 = vunpack.c.l.s4 1934713408
          %v925 = vunpack.c.0.s8 %v924
          %v926 = vlaneseq
          %v927 = vshrl.u32 %v926, 7
          %v928 = vsub.s32 %v925, %v927
          %v929 = vrot.slane %v915, %v928
          %v930 = vcombine.low %v905, %v913
          %v931 = vcombine.high %v905, %v913
          %v933 = vunpack.c.l.s4 1934713408
          %v934 = vunpack.c.0.s8 %v933
          %v935 = vlaneseq
          %v936 = vshrl.u32 %v935, 7
          %v937 = vsub.s32 %v934, %v936
          %v938 = vrot.slane %v930, %v937
          %v940 = vunpack.c.l.s4 1934713408
          %v941 = vunpack.c.0.s8 %v940
          %v942 = vlaneseq
          %v943 = vshrl.u32 %v942, 7
          %v944 = vsub.s32 %v941, %v943
          %v945 = vrot.slane %v931, %v944
          %v946 = vcombine.low %v922, %v938
          %v947 = vcombine.high %v922, %v938
          %v948 = vcombine.low %v929, %v945
          %v949 = vcombine.high %v929, %v945
          %v950 = vpack.c.bf16 %v946, %v946
          %v951 = vpack.c.bf16 %v947, %v947
          %v952 = vpack.c.bf16 %v948, %v948
          %v953 = vpack.c.bf16 %v949, %v949
          %vm954 = vcmask 60416
          %955 = vst.msk [vmem:[#allocation2] sm:$0xf] %vm954, %v950
          %956 = vst.msk [vmem:[#allocation2 + $0x4] sm:$0xf] %vm954, %v951
          %957 = vst.msk [vmem:[#allocation2 + $0x8] sm:$0xf] %vm954, %v952
          %958 = vst.msk [vmem:[#allocation2 + $0xc] sm:$0xf] %vm954, %v953
          %960 = vrot.lane.b32.xlu0 %v799, 120
          %v961 = vpop.permute.xlu0 %960
          %963 = vrot.lane.b32.xlu0 %v799, 112
          %v964 = vpop.permute.xlu0 %963
          %966 = vrot.lane.b32.xlu0 %v799, 104
          %v967 = vpop.permute.xlu0 %966
          %v969 = vcombine.low %v799, %v964
          %v970 = vcombine.high %v799, %v964
          %v972 = vunpack.c.l.s4 1983009808
          %v973 = vunpack.c.0.s8 %v972
          %v974 = vlaneseq
          %v975 = vshrl.u32 %v974, 7
          %v976 = vsub.s32 %v973, %v975
          %v977 = vrot.slane %v969, %v976
          %v979 = vunpack.c.l.s4 1983009808
          %v980 = vunpack.c.0.s8 %v979
          %v981 = vlaneseq
          %v982 = vshrl.u32 %v981, 7
          %v983 = vsub.s32 %v980, %v982
          %v984 = vrot.slane %v970, %v983
          %v985 = vcombine.low %v961, %v967
          %v986 = vcombine.high %v961, %v967
          %v988 = vunpack.c.l.s4 1983009808
          %v989 = vunpack.c.0.s8 %v988
          %v990 = vlaneseq
          %v991 = vshrl.u32 %v990, 7
          %v992 = vsub.s32 %v989, %v991
          %v993 = vrot.slane %v985, %v992
          %v995 = vunpack.c.l.s4 1983009808
          %v996 = vunpack.c.0.s8 %v995
          %v997 = vlaneseq
          %v998 = vshrl.u32 %v997, 7
          %v999 = vsub.s32 %v996, %v998
          %v1000 = vrot.slane %v986, %v999
          %v1001 = vcombine.low %v977, %v993
          %v1002 = vcombine.high %v977, %v993
          %v1004 = vunpack.c.l.s4 1934713408
          %v1005 = vunpack.c.0.s8 %v1004
          %v1006 = vlaneseq
          %v1007 = vshrl.u32 %v1006, 7
          %v1008 = vsub.s32 %v1005, %v1007
          %v1009 = vrot.slane %v1001, %v1008
          %v1011 = vunpack.c.l.s4 1934713408
          %v1012 = vunpack.c.0.s8 %v1011
          %v1013 = vlaneseq
          %v1014 = vshrl.u32 %v1013, 7
          %v1015 = vsub.s32 %v1012, %v1014
          %v1016 = vrot.slane %v1002, %v1015
          %v1017 = vcombine.low %v984, %v1000
          %v1018 = vcombine.high %v984, %v1000
          %v1020 = vunpack.c.l.s4 1934713408
          %v1021 = vunpack.c.0.s8 %v1020
          %v1022 = vlaneseq
          %v1023 = vshrl.u32 %v1022, 7
          %v1024 = vsub.s32 %v1021, %v1023
          %v1025 = vrot.slane %v1017, %v1024
          %v1027 = vunpack.c.l.s4 1934713408
          %v1028 = vunpack.c.0.s8 %v1027
          %v1029 = vlaneseq
          %v1030 = vshrl.u32 %v1029, 7
          %v1031 = vsub.s32 %v1028, %v1030
          %v1032 = vrot.slane %v1018, %v1031
          %v1033 = vcombine.high %v1009, 0.0
          %v1034 = vcombine.high %v1016, 0.0
          %v1035 = vcombine.high %v1025, 0.0
          %v1036 = vcombine.high %v1032, 0.0
          %v1037 = vcombine.low %v1009, %v1016
          %v1039 = vunpack.c.l.s4 1983009808
          %v1040 = vunpack.c.0.s8 %v1039
          %v1041 = vlaneseq
          %v1042 = vshrl.u32 %v1041, 7
          %v1043 = vsub.s32 %v1040, %v1042
          %v1044 = vrot.slane %v1037, %v1043
          %v1045 = vcombine.low %v1033, %v1034
          %v1047 = vunpack.c.l.s4 1983009808
          %v1048 = vunpack.c.0.s8 %v1047
          %v1049 = vlaneseq
          %v1050 = vshrl.u32 %v1049, 7
          %v1051 = vsub.s32 %v1048, %v1050
          %v1052 = vrot.slane %v1045, %v1051
          %v1053 = vcombine.low %v1025, %v1032
          %v1055 = vunpack.c.l.s4 1983009808
          %v1056 = vunpack.c.0.s8 %v1055
          %v1057 = vlaneseq
          %v1058 = vshrl.u32 %v1057, 7
          %v1059 = vsub.s32 %v1056, %v1058
          %v1060 = vrot.slane %v1053, %v1059
          %v1061 = vcombine.low %v1035, %v1036
          %v1063 = vunpack.c.l.s4 1983009808
          %v1064 = vunpack.c.0.s8 %v1063
          %v1065 = vlaneseq
          %v1066 = vshrl.u32 %v1065, 7
          %v1067 = vsub.s32 %v1064, %v1066
          %v1068 = vrot.slane %v1061, %v1067
          %v1069 = vcombine.low %v1044, %v1052
          %v1070 = vcombine.high %v1044, %v1052
          %v1072 = vunpack.c.l.s4 1934713408
          %v1073 = vunpack.c.0.s8 %v1072
          %v1074 = vlaneseq
          %v1075 = vshrl.u32 %v1074, 7
          %v1076 = vsub.s32 %v1073, %v1075
          %v1077 = vrot.slane %v1069, %v1076
          %v1079 = vunpack.c.l.s4 1934713408
          %v1080 = vunpack.c.0.s8 %v1079
          %v1081 = vlaneseq
          %v1082 = vshrl.u32 %v1081, 7
          %v1083 = vsub.s32 %v1080, %v1082
          %v1084 = vrot.slane %v1070, %v1083
          %v1085 = vcombine.low %v1060, %v1068
          %v1086 = vcombine.high %v1060, %v1068
          %v1088 = vunpack.c.l.s4 1934713408
          %v1089 = vunpack.c.0.s8 %v1088
          %v1090 = vlaneseq
          %v1091 = vshrl.u32 %v1090, 7
          %v1092 = vsub.s32 %v1089, %v1091
          %v1093 = vrot.slane %v1085, %v1092
          %v1095 = vunpack.c.l.s4 1934713408
          %v1096 = vunpack.c.0.s8 %v1095
          %v1097 = vlaneseq
          %v1098 = vshrl.u32 %v1097, 7
          %v1099 = vsub.s32 %v1096, %v1098
          %v1100 = vrot.slane %v1086, %v1099
          %v1101 = vcombine.low %v1077, %v1093
          %v1102 = vcombine.high %v1077, %v1093
          %v1103 = vcombine.low %v1084, %v1100
          %v1104 = vcombine.high %v1084, %v1100
          %v1105 = vpack.c.bf16 %v1101, %v1101
          %v1106 = vpack.c.bf16 %v1102, %v1102
          %v1107 = vpack.c.bf16 %v1103, %v1103
          %v1108 = vpack.c.bf16 %v1104, %v1104
          %1109 = vst.msk [vmem:[#allocation3] sm:$0xf] %vm954, %v1105
          %1110 = vst.msk [vmem:[#allocation3 + $0x4] sm:$0xf] %vm954, %v1106
          %1111 = vst.msk [vmem:[#allocation3 + $0x8] sm:$0xf] %vm954, %v1107
          %1112 = vst.msk [vmem:[#allocation3 + $0xc] sm:$0xf] %vm954, %v1108
        $region112: #{tpu_custom_call.1} parent=91 // pred_fallthru
          _
        %s1113 = smul.u32 %s44, 8
        %s1114 = sshra.s32 %s1113, 3
        %s1115 = sand.u32 %s1113, 7
        %s1116 = smul.addr %s1114, 4
        %s1117 = scalar_lea.vmem %s595, %s1116 [#allocation4]
        %v1118 = vld [vmem:[%s1117] sm:$0xf]
        %v1119 = vunpack.c.l.bf16 %v1118
        %v1120 = vld [vmem:[%s2] sm:$0xf]
        %v1121 = vld [vmem:[%s2 + $0x4] sm:$0xf]
        %v1122 = vld [vmem:[%s2 + $0x8] sm:$0xf]
        %v1123 = vld [vmem:[%s2 + $0xc] sm:$0xf]
        %v1124 = vld [vmem:[%s3] sm:$0x1]
        %v1126 = vlaneseq
        %v1127 = vshrl.u32 %v1126, 7
        %v1128 = vsub.s32 0, %v1127
        %v1129 = vrot.slane %v1124, %v1128
        %v1135 = vunpack.c.l.b16 %v1120
        %v1136 = vunpack.c.l.b16 %v1121
        %v1137 = vunpack.c.l.b16 %v1122
        %v1138 = vunpack.c.l.b16 %v1123
        %v1139 = vpack.c.b16 %v1136, %v1135
        %v1140 = vpack.c.b16 %v1138, %v1137
        %vm1143 = vcmask 261120
        %v1145 = vsel %vm1143, %v1118, 0
        %1147 = vmatprep.subr.bf16.mxu0 0
        %1148 = vmatpush1.bf16.msra.mxu0 0
        %1149 = vmatprep.subr.bf16.mxu0 0
        %1150 = vmatpush1.bf16.msra.mxu0 0
        %1151 = vmatprep.subr.bf16.mxu0 0
        %1152 = vmatpush1.bf16.msra.mxu0 0
        %1153 = vmatprep.subr.bf16.mxu0 0
        %1154 = vmatpush1.bf16.msra.mxu0 0
        %1155 = vmatprep.subr.bf16.mxu0 0
        %1156 = vmatpush1.bf16.msra.mxu0 0
        %1157 = vmatprep.subr.bf16.mxu0 0
        %1158 = vmatpush1.bf16.msra.mxu0 0
        %1159 = vmatprep.subr.bf16.mxu0 0
        %1160 = vmatpush1.bf16.msra.mxu0 %v1140
        %1161 = vmatprep.subr.bf16.mxu0 0
        %1162 = vmatpush1.bf16.msra.mxu0 %v1139
        %1163 = vmatprep.subr.bf16.mxu0 0
        %1164 = vmatpush2.bf16.msra.mxu0 0
        %1165 = vmatprep.subr.bf16.mxu0 0
        %1166 = vmatpush2.bf16.msra.mxu0 0
        %1167 = vmatprep.subr.bf16.mxu0 0
        %1168 = vmatpush2.bf16.msra.mxu0 0
        %1169 = vmatprep.subr.bf16.mxu0 0
        %1170 = vmatpush2.bf16.msra.mxu0 0
        %1171 = vmatprep.subr.bf16.mxu0 0
        %1172 = vmatpush2.bf16.msra.mxu0 0
        %1173 = vmatprep.subr.bf16.mxu0 0
        %1174 = vmatpush2.bf16.msra.mxu0 0
        %1175 = vmatprep.subr.bf16.mxu0 0
        %1176 = vmatpush2.bf16.msra.mxu0 0
        %1177 = vmatprep.subr.bf16.mxu0 0
        %1178 = vmatpush2.bf16.msra.mxu0 0
        %1179 = vmatprep.mubr.bf16.mxu0 0
        %1180 = vmatmul.mubr.bf16.gmra.mxu0 %v1145
        %v1181 = vpop.f32.mrf.mxu0
        %v1182 = vadd.f32 %v1129, %v1181
        %v1183 = vpop.f32.mrf.mxu0
        %v1184 = vpop.f32.mrf.mxu0
        %v1185 = vpop.f32.mrf.mxu0
        %1186 = vdwg.mxu0
        %1188 = vrot.lane.b32.xlu0 %v1182, 120
        %v1189 = vpop.permute.xlu0 %1188
        %1191 = vrot.lane.b32.xlu0 %v1182, 112
        %v1192 = vpop.permute.xlu0 %1191
        %1194 = vrot.lane.b32.xlu0 %v1182, 104
        %v1195 = vpop.permute.xlu0 %1194
        %v1197 = vcombine.low %v1182, %v1192
        %v1198 = vcombine.high %v1182, %v1192
        %v1200 = vunpack.c.l.s4 1983009808
        %v1201 = vunpack.c.0.s8 %v1200
        %v1202 = vlaneseq
        %v1203 = vshrl.u32 %v1202, 7
        %v1204 = vsub.s32 %v1201, %v1203
        %v1205 = vrot.slane %v1197, %v1204
        %v1207 = vunpack.c.l.s4 1983009808
        %v1208 = vunpack.c.0.s8 %v1207
        %v1209 = vlaneseq
        %v1210 = vshrl.u32 %v1209, 7
        %v1211 = vsub.s32 %v1208, %v1210
        %v1212 = vrot.slane %v1198, %v1211
        %v1213 = vcombine.low %v1189, %v1195
        %v1214 = vcombine.high %v1189, %v1195
        %v1216 = vunpack.c.l.s4 1983009808
        %v1217 = vunpack.c.0.s8 %v1216
        %v1218 = vlaneseq
        %v1219 = vshrl.u32 %v1218, 7
        %v1220 = vsub.s32 %v1217, %v1219
        %v1221 = vrot.slane %v1213, %v1220
        %v1223 = vunpack.c.l.s4 1983009808
        %v1224 = vunpack.c.0.s8 %v1223
        %v1225 = vlaneseq
        %v1226 = vshrl.u32 %v1225, 7
        %v1227 = vsub.s32 %v1224, %v1226
        %v1228 = vrot.slane %v1214, %v1227
        %v1229 = vcombine.low %v1205, %v1221
        %v1230 = vcombine.high %v1205, %v1221
        %v1232 = vunpack.c.l.s4 1934713408
        %v1233 = vunpack.c.0.s8 %v1232
        %v1234 = vlaneseq
        %v1235 = vshrl.u32 %v1234, 7
        %v1236 = vsub.s32 %v1233, %v1235
        %v1237 = vrot.slane %v1229, %v1236
        %v1239 = vunpack.c.l.s4 1934713408
        %v1240 = vunpack.c.0.s8 %v1239
        %v1241 = vlaneseq
        %v1242 = vshrl.u32 %v1241, 7
        %v1243 = vsub.s32 %v1240, %v1242
        %v1244 = vrot.slane %v1230, %v1243
        %v1245 = vcombine.low %v1212, %v1228
        %v1246 = vcombine.high %v1212, %v1228
        %v1248 = vunpack.c.l.s4 1934713408
        %v1249 = vunpack.c.0.s8 %v1248
        %v1250 = vlaneseq
        %v1251 = vshrl.u32 %v1250, 7
        %v1252 = vsub.s32 %v1249, %v1251
        %v1253 = vrot.slane %v1245, %v1252
        %v1255 = vunpack.c.l.s4 1934713408
        %v1256 = vunpack.c.0.s8 %v1255
        %v1257 = vlaneseq
        %v1258 = vshrl.u32 %v1257, 7
        %v1259 = vsub.s32 %v1256, %v1258
        %v1260 = vrot.slane %v1246, %v1259
        %v1261 = vcombine.high %v1237, 0.0
        %v1262 = vcombine.high %v1244, 0.0
        %v1263 = vcombine.high %v1253, 0.0
        %v1264 = vcombine.high %v1260, 0.0
        %v1265 = vcombine.low %v1237, %v1244
        %v1267 = vunpack.c.l.s4 1983009808
        %v1268 = vunpack.c.0.s8 %v1267
        %v1269 = vlaneseq
        %v1270 = vshrl.u32 %v1269, 7
        %v1271 = vsub.s32 %v1268, %v1270
        %v1272 = vrot.slane %v1265, %v1271
        %v1273 = vcombine.low %v1261, %v1262
        %v1275 = vunpack.c.l.s4 1983009808
        %v1276 = vunpack.c.0.s8 %v1275
        %v1277 = vlaneseq
        %v1278 = vshrl.u32 %v1277, 7
        %v1279 = vsub.s32 %v1276, %v1278
        %v1280 = vrot.slane %v1273, %v1279
        %v1281 = vcombine.low %v1253, %v1260
        %v1283 = vunpack.c.l.s4 1983009808
        %v1284 = vunpack.c.0.s8 %v1283
        %v1285 = vlaneseq
        %v1286 = vshrl.u32 %v1285, 7
        %v1287 = vsub.s32 %v1284, %v1286
        %v1288 = vrot.slane %v1281, %v1287
        %v1289 = vcombine.low %v1263, %v1264
        %v1291 = vunpack.c.l.s4 1983009808
        %v1292 = vunpack.c.0.s8 %v1291
        %v1293 = vlaneseq
        %v1294 = vshrl.u32 %v1293, 7
        %v1295 = vsub.s32 %v1292, %v1294
        %v1296 = vrot.slane %v1289, %v1295
        %v1297 = vcombine.low %v1272, %v1280
        %v1298 = vcombine.high %v1272, %v1280
        %v1300 = vunpack.c.l.s4 1934713408
        %v1301 = vunpack.c.0.s8 %v1300
        %v1302 = vlaneseq
        %v1303 = vshrl.u32 %v1302, 7
        %v1304 = vsub.s32 %v1301, %v1303
        %v1305 = vrot.slane %v1297, %v1304
        %v1307 = vunpack.c.l.s4 1934713408
        %v1308 = vunpack.c.0.s8 %v1307
        %v1309 = vlaneseq
        %v1310 = vshrl.u32 %v1309, 7
        %v1311 = vsub.s32 %v1308, %v1310
        %v1312 = vrot.slane %v1298, %v1311
        %v1313 = vcombine.low %v1288, %v1296
        %v1314 = vcombine.high %v1288, %v1296
        %v1316 = vunpack.c.l.s4 1934713408
        %v1317 = vunpack.c.0.s8 %v1316
        %v1318 = vlaneseq
        %v1319 = vshrl.u32 %v1318, 7
        %v1320 = vsub.s32 %v1317, %v1319
        %v1321 = vrot.slane %v1313, %v1320
        %v1323 = vunpack.c.l.s4 1934713408
        %v1324 = vunpack.c.0.s8 %v1323
        %v1325 = vlaneseq
        %v1326 = vshrl.u32 %v1325, 7
        %v1327 = vsub.s32 %v1324, %v1326
        %v1328 = vrot.slane %v1314, %v1327
        %v1329 = vcombine.low %v1305, %v1321
        %v1330 = vcombine.high %v1305, %v1321
        %v1331 = vcombine.low %v1312, %v1328
        %v1332 = vcombine.high %v1312, %v1328
        %v1333 = vpack.c.bf16 %v1329, %v1329
        %v1334 = vpack.c.bf16 %v1330, %v1330
        %v1335 = vpack.c.bf16 %v1331, %v1331
        %v1336 = vpack.c.bf16 %v1332, %v1332
        %v1337 = vld [vmem:[%s603] sm:$0x1]
        %v1338 = vld [vmem:[#allocation2] sm:$0xf]
        %v1339 = vld [vmem:[#allocation2 + $0x4] sm:$0xf]
        %v1340 = vld [vmem:[#allocation2 + $0x8] sm:$0xf]
        %v1341 = vld [vmem:[#allocation2 + $0xc] sm:$0xf]
        %v1343 = vlaneseq
        %v1344 = vshrl.u32 %v1343, 7
        %v1345 = vsub.s32 0, %v1344
        %v1346 = vrot.slane %v1337, %v1345
        %vm1348 = vcmask 64512
        %v1350 = vsel %vm1348, %v1333, 0
        %v1353 = vsel %vm1348, %v1338, 0
        %1355 = vmatprep.subr.bf16.mxu0 0
        %1356 = vmatpush1.bf16.xpose.msra.mxu0 0
        %1357 = vmatprep.subr.bf16.mxu0 0
        %1358 = vmatpush1.bf16.xpose.msra.mxu0 0
        %1359 = vmatprep.subr.bf16.mxu0 0
        %1360 = vmatpush1.bf16.xpose.msra.mxu0 0
        %1361 = vmatprep.subr.bf16.mxu0 0
        %1362 = vmatpush1.bf16.xpose.msra.mxu0 0
        %1363 = vmatprep.subr.bf16.mxu0 0
        %1364 = vmatpush1.bf16.xpose.msra.mxu0 0
        %1365 = vmatprep.subr.bf16.mxu0 0
        %1366 = vmatpush1.bf16.xpose.msra.mxu0 0
        %1367 = vmatprep.subr.bf16.mxu0 0
        %1368 = vmatpush1.bf16.xpose.msra.mxu0 0
        %1369 = vmatprep.subr.bf16.mxu0 0
        %1370 = vmatpush1.bf16.xpose.msra.mxu0 %v1353
        %1371 = vmatprep.subr.bf16.mxu0 0
        %1372 = vmatpush2.bf16.xpose.msra.mxu0 0
        %1373 = vmatprep.subr.bf16.mxu0 0
        %1374 = vmatpush2.bf16.xpose.msra.mxu0 0
        %1375 = vmatprep.subr.bf16.mxu0 0
        %1376 = vmatpush2.bf16.xpose.msra.mxu0 0
        %1377 = vmatprep.subr.bf16.mxu0 0
        %1378 = vmatpush2.bf16.xpose.msra.mxu0 0
        %1379 = vmatprep.subr.bf16.mxu0 0
        %1380 = vmatpush2.bf16.xpose.msra.mxu0 0
        %1381 = vmatprep.subr.bf16.mxu0 0
        %1382 = vmatpush2.bf16.xpose.msra.mxu0 0
        %1383 = vmatprep.subr.bf16.mxu0 0
        %1384 = vmatpush2.bf16.xpose.msra.mxu0 0
        %1385 = vmatprep.subr.bf16.mxu0 0
        %1386 = vmatpush2.bf16.xpose.msra.mxu0 0
        %1387 = vmatprep.mubr.bf16.mxu0 0
        %1388 = vmatmul.mubr.bf16.gmra.mxu0 %v1350
        %v1389 = vpop.f32.mrf.mxu0
        %v1390 = vadd.f32 %v1346, %v1389
        %v1391 = vpop.f32.mrf.mxu0
        %v1392 = vpop.f32.mrf.mxu0
        %v1393 = vpop.f32.mrf.mxu0
        %1394 = vdwg.mxu0
        %v1396 = vsel %vm1348, %v1334, 0
        %v1399 = vsel %vm1348, %v1339, 0
        %1401 = vmatprep.subr.bf16.mxu0 0
        %1402 = vmatpush1.bf16.xpose.msra.mxu0 0
        %1403 = vmatprep.subr.bf16.mxu0 0
        %1404 = vmatpush1.bf16.xpose.msra.mxu0 0
        %1405 = vmatprep.subr.bf16.mxu0 0
        %1406 = vmatpush1.bf16.xpose.msra.mxu0 0
        %1407 = vmatprep.subr.bf16.mxu0 0
        %1408 = vmatpush1.bf16.xpose.msra.mxu0 0
        %1409 = vmatprep.subr.bf16.mxu0 0
        %1410 = vmatpush1.bf16.xpose.msra.mxu0 0
        %1411 = vmatprep.subr.bf16.mxu0 0
        %1412 = vmatpush1.bf16.xpose.msra.mxu0 0
        %1413 = vmatprep.subr.bf16.mxu0 0
        %1414 = vmatpush1.bf16.xpose.msra.mxu0 0
        %1415 = vmatprep.subr.bf16.mxu0 0
        %1416 = vmatpush1.bf16.xpose.msra.mxu0 %v1399
        %1417 = vmatprep.subr.bf16.mxu0 0
        %1418 = vmatpush2.bf16.xpose.msra.mxu0 0
        %1419 = vmatprep.subr.bf16.mxu0 0
        %1420 = vmatpush2.bf16.xpose.msra.mxu0 0
        %1421 = vmatprep.subr.bf16.mxu0 0
        %1422 = vmatpush2.bf16.xpose.msra.mxu0 0
        %1423 = vmatprep.subr.bf16.mxu0 0
        %1424 = vmatpush2.bf16.xpose.msra.mxu0 0
        %1425 = vmatprep.subr.bf16.mxu0 0
        %1426 = vmatpush2.bf16.xpose.msra.mxu0 0
        %1427 = vmatprep.subr.bf16.mxu0 0
        %1428 = vmatpush2.bf16.xpose.msra.mxu0 0
        %1429 = vmatprep.subr.bf16.mxu0 0
        %1430 = vmatpush2.bf16.xpose.msra.mxu0 0
        %1431 = vmatprep.subr.bf16.mxu0 0
        %1432 = vmatpush2.bf16.xpose.msra.mxu0 0
        %1433 = vmatprep.mubr.bf16.mxu0 0
        %1434 = vmatmul.mubr.bf16.gmra.mxu0 %v1396
        %v1435 = vpop.f32.mrf.mxu0
        %v1436 = vadd.f32 %v1346, %v1435
        %v1437 = vpop.f32.mrf.mxu0
        %v1438 = vpop.f32.mrf.mxu0
        %v1439 = vpop.f32.mrf.mxu0
        %1440 = vdwg.mxu0
        %v1442 = vsel %vm1348, %v1335, 0
        %v1445 = vsel %vm1348, %v1340, 0
        %1447 = vmatprep.subr.bf16.mxu0 0
        %1448 = vmatpush1.bf16.xpose.msra.mxu0 0
        %1449 = vmatprep.subr.bf16.mxu0 0
        %1450 = vmatpush1.bf16.xpose.msra.mxu0 0
        %1451 = vmatprep.subr.bf16.mxu0 0
        %1452 = vmatpush1.bf16.xpose.msra.mxu0 0
        %1453 = vmatprep.subr.bf16.mxu0 0
        %1454 = vmatpush1.bf16.xpose.msra.mxu0 0
        %1455 = vmatprep.subr.bf16.mxu0 0
        %1456 = vmatpush1.bf16.xpose.msra.mxu0 0
        %1457 = vmatprep.subr.bf16.mxu0 0
        %1458 = vmatpush1.bf16.xpose.msra.mxu0 0
        %1459 = vmatprep.subr.bf16.mxu0 0
        %1460 = vmatpush1.bf16.xpose.msra.mxu0 0
        %1461 = vmatprep.subr.bf16.mxu0 0
        %1462 = vmatpush1.bf16.xpose.msra.mxu0 %v1445
        %1463 = vmatprep.subr.bf16.mxu0 0
        %1464 = vmatpush2.bf16.xpose.msra.mxu0 0
        %1465 = vmatprep.subr.bf16.mxu0 0
        %1466 = vmatpush2.bf16.xpose.msra.mxu0 0
        %1467 = vmatprep.subr.bf16.mxu0 0
        %1468 = vmatpush2.bf16.xpose.msra.mxu0 0
        %1469 = vmatprep.subr.bf16.mxu0 0
        %1470 = vmatpush2.bf16.xpose.msra.mxu0 0
        %1471 = vmatprep.subr.bf16.mxu0 0
        %1472 = vmatpush2.bf16.xpose.msra.mxu0 0
        %1473 = vmatprep.subr.bf16.mxu0 0
        %1474 = vmatpush2.bf16.xpose.msra.mxu0 0
        %1475 = vmatprep.subr.bf16.mxu0 0
        %1476 = vmatpush2.bf16.xpose.msra.mxu0 0
        %1477 = vmatprep.subr.bf16.mxu0 0
        %1478 = vmatpush2.bf16.xpose.msra.mxu0 0
        %1479 = vmatprep.mubr.bf16.mxu0 0
        %1480 = vmatmul.mubr.bf16.gmra.mxu0 %v1442
        %v1481 = vpop.f32.mrf.mxu0
        %v1482 = vadd.f32 %v1346, %v1481
        %v1483 = vpop.f32.mrf.mxu0
        %v1484 = vpop.f32.mrf.mxu0
        %v1485 = vpop.f32.mrf.mxu0
        %1486 = vdwg.mxu0
        %v1488 = vsel %vm1348, %v1336, 0
        %v1491 = vsel %vm1348, %v1341, 0
        %1493 = vmatprep.subr.bf16.mxu0 0
        %1494 = vmatpush1.bf16.xpose.msra.mxu0 0
        %1495 = vmatprep.subr.bf16.mxu0 0
        %1496 = vmatpush1.bf16.xpose.msra.mxu0 0
        %1497 = vmatprep.subr.bf16.mxu0 0
        %1498 = vmatpush1.bf16.xpose.msra.mxu0 0
        %1499 = vmatprep.subr.bf16.mxu0 0
        %1500 = vmatpush1.bf16.xpose.msra.mxu0 0
        %1501 = vmatprep.subr.bf16.mxu0 0
        %1502 = vmatpush1.bf16.xpose.msra.mxu0 0
        %1503 = vmatprep.subr.bf16.mxu0 0
        %1504 = vmatpush1.bf16.xpose.msra.mxu0 0
        %1505 = vmatprep.subr.bf16.mxu0 0
        %1506 = vmatpush1.bf16.xpose.msra.mxu0 0
        %1507 = vmatprep.subr.bf16.mxu0 0
        %1508 = vmatpush1.bf16.xpose.msra.mxu0 %v1491
        %1509 = vmatprep.subr.bf16.mxu0 0
        %1510 = vmatpush2.bf16.xpose.msra.mxu0 0
        %1511 = vmatprep.subr.bf16.mxu0 0
        %1512 = vmatpush2.bf16.xpose.msra.mxu0 0
        %1513 = vmatprep.subr.bf16.mxu0 0
        %1514 = vmatpush2.bf16.xpose.msra.mxu0 0
        %1515 = vmatprep.subr.bf16.mxu0 0
        %1516 = vmatpush2.bf16.xpose.msra.mxu0 0
        %1517 = vmatprep.subr.bf16.mxu0 0
        %1518 = vmatpush2.bf16.xpose.msra.mxu0 0
        %1519 = vmatprep.subr.bf16.mxu0 0
        %1520 = vmatpush2.bf16.xpose.msra.mxu0 0
        %1521 = vmatprep.subr.bf16.mxu0 0
        %1522 = vmatpush2.bf16.xpose.msra.mxu0 0
        %1523 = vmatprep.subr.bf16.mxu0 0
        %1524 = vmatpush2.bf16.xpose.msra.mxu0 0
        %1525 = vmatprep.mubr.bf16.mxu0 0
        %1526 = vmatmul.mubr.bf16.gmra.mxu0 %v1488
        %v1527 = vpop.f32.mrf.mxu0
        %v1528 = vadd.f32 %v1346, %v1527
        %v1529 = vpop.f32.mrf.mxu0
        %v1530 = vpop.f32.mrf.mxu0
        %v1531 = vpop.f32.mrf.mxu0
        %1532 = vdwg.mxu0
        %v1533 = vsel %vm1348, %v1390, -inf
        %1534 = vmax.xlane.f32.xlu0 %v1533
        %v1535 = vpop.xlane.xlu0 %1534
        %v1536 = vsel %vm1348, %v1436, -inf
        %1537 = vmax.xlane.f32.xlu0 %v1536
        %v1538 = vpop.xlane.xlu0 %1537
        %v1539 = vsel %vm1348, %v1482, -inf
        %1540 = vmax.xlane.f32.xlu0 %v1539
        %v1541 = vpop.xlane.xlu0 %1540
        %v1542 = vsel %vm1348, %v1528, -inf
        %1543 = vmax.xlane.f32.xlu0 %v1542
        %v1544 = vpop.xlane.xlu0 %1543
        %v1545 = vsub.f32 %v1390, %v1535
        %v1546 = vsub.f32 %v1436, %v1538
        %v1547 = vsub.f32 %v1482, %v1541
        %v1548 = vsub.f32 %v1528, %v1544
        %v1549 = vmul.f32 %v1545, 1.442695
        %v1550 = vpow.pop %v1549
        %v1551 = vmul.f32 %v1546, 1.442695
        %v1552 = vpow.pop %v1551
        %v1553 = vmul.f32 %v1547, 1.442695
        %v1554 = vpow.pop %v1553
        %v1555 = vmul.f32 %v1548, 1.442695
        %v1556 = vpow.pop %v1555
        %v1557 = vsel %vm1348, %v1550, 0.0
        %1558 = vadd.xlane.f32.xlu0 %v1557
        %v1559 = vpop.xlane.xlu0 %1558
        %v1560 = vsel %vm1348, %v1552, 0.0
        %1561 = vadd.xlane.f32.xlu0 %v1560
        %v1562 = vpop.xlane.xlu0 %1561
        %v1563 = vsel %vm1348, %v1554, 0.0
        %1564 = vadd.xlane.f32.xlu0 %v1563
        %v1565 = vpop.xlane.xlu0 %1564
        %v1566 = vsel %vm1348, %v1556, 0.0
        %1567 = vadd.xlane.f32.xlu0 %v1566
        %v1568 = vpop.xlane.xlu0 %1567
        %v1569 = vpack.c.bf16 %v1550, %v1550
        %v1570 = vpack.c.bf16 %v1552, %v1552
        %v1571 = vpack.c.bf16 %v1554, %v1554
        %v1572 = vpack.c.bf16 %v1556, %v1556
        %v1573 = vld [vmem:[#allocation3] sm:$0xf]
        %v1574 = vld [vmem:[#allocation3 + $0x4] sm:$0xf]
        %v1575 = vld [vmem:[#allocation3 + $0x8] sm:$0xf]
        %v1576 = vld [vmem:[#allocation3 + $0xc] sm:$0xf]
        %v1578 = vsel %vm1348, %v1569, 0
        %vm1580 = vcmask 1043456
        %v1582 = vsel %vm1580, %v1573, 0
        %1584 = vmatprep.subr.bf16.mxu0 0
        %1585 = vmatpush1.bf16.msra.mxu0 0
        %1586 = vmatprep.subr.bf16.mxu0 0
        %1587 = vmatpush1.bf16.msra.mxu0 0
        %1588 = vmatprep.subr.bf16.mxu0 0
        %1589 = vmatpush1.bf16.msra.mxu0 0
        %1590 = vmatprep.subr.bf16.mxu0 0
        %1591 = vmatpush1.bf16.msra.mxu0 0
        %1592 = vmatprep.subr.bf16.mxu0 0
        %1593 = vmatpush1.bf16.msra.mxu0 0
        %1594 = vmatprep.subr.bf16.mxu0 0
        %1595 = vmatpush1.bf16.msra.mxu0 0
        %1596 = vmatprep.subr.bf16.mxu0 0
        %1597 = vmatpush1.bf16.msra.mxu0 0
        %1598 = vmatprep.subr.bf16.mxu0 0
        %1599 = vmatpush1.bf16.msra.mxu0 %v1582
        %1600 = vmatprep.subr.bf16.mxu0 0
        %1601 = vmatpush2.bf16.msra.mxu0 0
        %1602 = vmatprep.subr.bf16.mxu0 0
        %1603 = vmatpush2.bf16.msra.mxu0 0
        %1604 = vmatprep.subr.bf16.mxu0 0
        %1605 = vmatpush2.bf16.msra.mxu0 0
        %1606 = vmatprep.subr.bf16.mxu0 0
        %1607 = vmatpush2.bf16.msra.mxu0 0
        %1608 = vmatprep.subr.bf16.mxu0 0
        %1609 = vmatpush2.bf16.msra.mxu0 0
        %1610 = vmatprep.subr.bf16.mxu0 0
        %1611 = vmatpush2.bf16.msra.mxu0 0
        %1612 = vmatprep.subr.bf16.mxu0 0
        %1613 = vmatpush2.bf16.msra.mxu0 0
        %1614 = vmatprep.subr.bf16.mxu0 0
        %1615 = vmatpush2.bf16.msra.mxu0 0
        %1616 = vmatprep.mubr.bf16.mxu0 0
        %1617 = vmatmul.mubr.bf16.gmra.mxu0 %v1578
        %v1618 = vpop.f32.mrf.mxu0
        %v1619 = vadd.f32 0.0, %v1618
        %v1620 = vpop.f32.mrf.mxu0
        %v1621 = vpop.f32.mrf.mxu0
        %v1622 = vpop.f32.mrf.mxu0
        %1623 = vdwg.mxu0
        %v1625 = vsel %vm1348, %v1570, 0
        %v1628 = vsel %vm1580, %v1574, 0
        %1630 = vmatprep.subr.bf16.mxu0 0
        %1631 = vmatpush1.bf16.msra.mxu0 0
        %1632 = vmatprep.subr.bf16.mxu0 0
        %1633 = vmatpush1.bf16.msra.mxu0 0
        %1634 = vmatprep.subr.bf16.mxu0 0
        %1635 = vmatpush1.bf16.msra.mxu0 0
        %1636 = vmatprep.subr.bf16.mxu0 0
        %1637 = vmatpush1.bf16.msra.mxu0 0
        %1638 = vmatprep.subr.bf16.mxu0 0
        %1639 = vmatpush1.bf16.msra.mxu0 0
        %1640 = vmatprep.subr.bf16.mxu0 0
        %1641 = vmatpush1.bf16.msra.mxu0 0
        %1642 = vmatprep.subr.bf16.mxu0 0
        %1643 = vmatpush1.bf16.msra.mxu0 0
        %1644 = vmatprep.subr.bf16.mxu0 0
        %1645 = vmatpush1.bf16.msra.mxu0 %v1628
        %1646 = vmatprep.subr.bf16.mxu0 0
        %1647 = vmatpush2.bf16.msra.mxu0 0
        %1648 = vmatprep.subr.bf16.mxu0 0
        %1649 = vmatpush2.bf16.msra.mxu0 0
        %1650 = vmatprep.subr.bf16.mxu0 0
        %1651 = vmatpush2.bf16.msra.mxu0 0
        %1652 = vmatprep.subr.bf16.mxu0 0
        %1653 = vmatpush2.bf16.msra.mxu0 0
        %1654 = vmatprep.subr.bf16.mxu0 0
        %1655 = vmatpush2.bf16.msra.mxu0 0
        %1656 = vmatprep.subr.bf16.mxu0 0
        %1657 = vmatpush2.bf16.msra.mxu0 0
        %1658 = vmatprep.subr.bf16.mxu0 0
        %1659 = vmatpush2.bf16.msra.mxu0 0
        %1660 = vmatprep.subr.bf16.mxu0 0
        %1661 = vmatpush2.bf16.msra.mxu0 0
        %1662 = vmatprep.mubr.bf16.mxu0 0
        %1663 = vmatmul.mubr.bf16.gmra.mxu0 %v1625
        %v1664 = vpop.f32.mrf.mxu0
        %v1665 = vadd.f32 0.0, %v1664
        %v1666 = vpop.f32.mrf.mxu0
        %v1667 = vpop.f32.mrf.mxu0
        %v1668 = vpop.f32.mrf.mxu0
        %1669 = vdwg.mxu0
        %v1671 = vsel %vm1348, %v1571, 0
        %v1674 = vsel %vm1580, %v1575, 0
        %1676 = vmatprep.subr.bf16.mxu0 0
        %1677 = vmatpush1.bf16.msra.mxu0 0
        %1678 = vmatprep.subr.bf16.mxu0 0
        %1679 = vmatpush1.bf16.msra.mxu0 0
        %1680 = vmatprep.subr.bf16.mxu0 0
        %1681 = vmatpush1.bf16.msra.mxu0 0
        %1682 = vmatprep.subr.bf16.mxu0 0
        %1683 = vmatpush1.bf16.msra.mxu0 0
        %1684 = vmatprep.subr.bf16.mxu0 0
        %1685 = vmatpush1.bf16.msra.mxu0 0
        %1686 = vmatprep.subr.bf16.mxu0 0
        %1687 = vmatpush1.bf16.msra.mxu0 0
        %1688 = vmatprep.subr.bf16.mxu0 0
        %1689 = vmatpush1.bf16.msra.mxu0 0
        %1690 = vmatprep.subr.bf16.mxu0 0
        %1691 = vmatpush1.bf16.msra.mxu0 %v1674
        %1692 = vmatprep.subr.bf16.mxu0 0
        %1693 = vmatpush2.bf16.msra.mxu0 0
        %1694 = vmatprep.subr.bf16.mxu0 0
        %1695 = vmatpush2.bf16.msra.mxu0 0
        %1696 = vmatprep.subr.bf16.mxu0 0
        %1697 = vmatpush2.bf16.msra.mxu0 0
        %1698 = vmatprep.subr.bf16.mxu0 0
        %1699 = vmatpush2.bf16.msra.mxu0 0
        %1700 = vmatprep.subr.bf16.mxu0 0
        %1701 = vmatpush2.bf16.msra.mxu0 0
        %1702 = vmatprep.subr.bf16.mxu0 0
        %1703 = vmatpush2.bf16.msra.mxu0 0
        %1704 = vmatprep.subr.bf16.mxu0 0
        %1705 = vmatpush2.bf16.msra.mxu0 0
        %1706 = vmatprep.subr.bf16.mxu0 0
        %1707 = vmatpush2.bf16.msra.mxu0 0
        %1708 = vmatprep.mubr.bf16.mxu0 0
        %1709 = vmatmul.mubr.bf16.gmra.mxu0 %v1671
        %v1710 = vpop.f32.mrf.mxu0
        %v1711 = vadd.f32 0.0, %v1710
        %v1712 = vpop.f32.mrf.mxu0
        %v1713 = vpop.f32.mrf.mxu0
        %v1714 = vpop.f32.mrf.mxu0
        %1715 = vdwg.mxu0
        %v1717 = vsel %vm1348, %v1572, 0
        %v1720 = vsel %vm1580, %v1576, 0
        %1722 = vmatprep.subr.bf16.mxu0 0
        %1723 = vmatpush1.bf16.msra.mxu0 0
        %1724 = vmatprep.subr.bf16.mxu0 0
        %1725 = vmatpush1.bf16.msra.mxu0 0
        %1726 = vmatprep.subr.bf16.mxu0 0
        %1727 = vmatpush1.bf16.msra.mxu0 0
        %1728 = vmatprep.subr.bf16.mxu0 0
        %1729 = vmatpush1.bf16.msra.mxu0 0
        %1730 = vmatprep.subr.bf16.mxu0 0
        %1731 = vmatpush1.bf16.msra.mxu0 0
        %1732 = vmatprep.subr.bf16.mxu0 0
        %1733 = vmatpush1.bf16.msra.mxu0 0
        %1734 = vmatprep.subr.bf16.mxu0 0
        %1735 = vmatpush1.bf16.msra.mxu0 0
        %1736 = vmatprep.subr.bf16.mxu0 0
        %1737 = vmatpush1.bf16.msra.mxu0 %v1720
        %1738 = vmatprep.subr.bf16.mxu0 0
        %1739 = vmatpush2.bf16.msra.mxu0 0
        %1740 = vmatprep.subr.bf16.mxu0 0
        %1741 = vmatpush2.bf16.msra.mxu0 0
        %1742 = vmatprep.subr.bf16.mxu0 0
        %1743 = vmatpush2.bf16.msra.mxu0 0
        %1744 = vmatprep.subr.bf16.mxu0 0
        %1745 = vmatpush2.bf16.msra.mxu0 0
        %1746 = vmatprep.subr.bf16.mxu0 0
        %1747 = vmatpush2.bf16.msra.mxu0 0
        %1748 = vmatprep.subr.bf16.mxu0 0
        %1749 = vmatpush2.bf16.msra.mxu0 0
        %1750 = vmatprep.subr.bf16.mxu0 0
        %1751 = vmatpush2.bf16.msra.mxu0 0
        %1752 = vmatprep.subr.bf16.mxu0 0
        %1753 = vmatpush2.bf16.msra.mxu0 0
        %1754 = vmatprep.mubr.bf16.mxu0 0
        %1755 = vmatmul.mubr.bf16.gmra.mxu0 %v1717
        %v1756 = vpop.f32.mrf.mxu0
        %v1757 = vadd.f32 0.0, %v1756
        %v1758 = vpop.f32.mrf.mxu0
        %v1759 = vpop.f32.mrf.mxu0
        %v1760 = vpop.f32.mrf.mxu0
        %1761 = vdwg.mxu0
        %v1762 = vrcp.pop %v1559
        %v1763 = vmul.f32 %v1619, %v1762
        %v1764 = vrcp.pop %v1562
        %v1765 = vmul.f32 %v1665, %v1764
        %v1766 = vrcp.pop %v1565
        %v1767 = vmul.f32 %v1711, %v1766
        %v1768 = vrcp.pop %v1568
        %v1769 = vmul.f32 %v1757, %v1768
        %v1770 = vcombine.low %v1763, %v1767
        %v1771 = vcombine.high %v1763, %v1767
        %v1773 = vunpack.c.l.s4 1983009808
        %v1774 = vunpack.c.0.s8 %v1773
        %v1775 = vlaneseq
        %v1776 = vshrl.u32 %v1775, 7
        %v1777 = vsub.s32 %v1774, %v1776
        %v1778 = vrot.slane %v1770, %v1777
        %v1780 = vunpack.c.l.s4 1983009808
        %v1781 = vunpack.c.0.s8 %v1780
        %v1782 = vlaneseq
        %v1783 = vshrl.u32 %v1782, 7
        %v1784 = vsub.s32 %v1781, %v1783
        %v1785 = vrot.slane %v1771, %v1784
        %v1786 = vcombine.low %v1765, %v1769
        %v1787 = vcombine.high %v1765, %v1769
        %v1789 = vunpack.c.l.s4 1983009808
        %v1790 = vunpack.c.0.s8 %v1789
        %v1791 = vlaneseq
        %v1792 = vshrl.u32 %v1791, 7
        %v1793 = vsub.s32 %v1790, %v1792
        %v1794 = vrot.slane %v1786, %v1793
        %v1796 = vunpack.c.l.s4 1983009808
        %v1797 = vunpack.c.0.s8 %v1796
        %v1798 = vlaneseq
        %v1799 = vshrl.u32 %v1798, 7
        %v1800 = vsub.s32 %v1797, %v1799
        %v1801 = vrot.slane %v1787, %v1800
        %v1802 = vcombine.low %v1778, %v1794
        %v1803 = vcombine.high %v1778, %v1794
        %v1805 = vunpack.c.l.s4 1934713408
        %v1806 = vunpack.c.0.s8 %v1805
        %v1807 = vlaneseq
        %v1808 = vshrl.u32 %v1807, 7
        %v1809 = vsub.s32 %v1806, %v1808
        %v1810 = vrot.slane %v1802, %v1809
        %v1812 = vunpack.c.l.s4 1934713408
        %v1813 = vunpack.c.0.s8 %v1812
        %v1814 = vlaneseq
        %v1815 = vshrl.u32 %v1814, 7
        %v1816 = vsub.s32 %v1813, %v1815
        %v1817 = vrot.slane %v1803, %v1816
        %v1818 = vcombine.low %v1785, %v1801
        %v1819 = vcombine.high %v1785, %v1801
        %v1821 = vunpack.c.l.s4 1934713408
        %v1822 = vunpack.c.0.s8 %v1821
        %v1823 = vlaneseq
        %v1824 = vshrl.u32 %v1823, 7
        %v1825 = vsub.s32 %v1822, %v1824
        %v1826 = vrot.slane %v1818, %v1825
        %v1828 = vunpack.c.l.s4 1934713408
        %v1829 = vunpack.c.0.s8 %v1828
        %v1830 = vlaneseq
        %v1831 = vshrl.u32 %v1830, 7
        %v1832 = vsub.s32 %v1829, %v1831
        %v1833 = vrot.slane %v1819, %v1832
        %v1834 = vcombine.high %v1810, 0.0
        %v1835 = vcombine.high %v1817, 0.0
        %v1836 = vcombine.high %v1826, 0.0
        %v1837 = vcombine.high %v1833, 0.0
        %v1838 = vcombine.low %v1810, %v1817
        %v1840 = vunpack.c.l.s4 1983009808
        %v1841 = vunpack.c.0.s8 %v1840
        %v1842 = vlaneseq
        %v1843 = vshrl.u32 %v1842, 7
        %v1844 = vsub.s32 %v1841, %v1843
        %v1845 = vrot.slane %v1838, %v1844
        %v1846 = vcombine.low %v1834, %v1835
        %v1848 = vunpack.c.l.s4 1983009808
        %v1849 = vunpack.c.0.s8 %v1848
        %v1850 = vlaneseq
        %v1851 = vshrl.u32 %v1850, 7
        %v1852 = vsub.s32 %v1849, %v1851
        %v1853 = vrot.slane %v1846, %v1852
        %v1854 = vcombine.low %v1826, %v1833
        %v1856 = vunpack.c.l.s4 1983009808
        %v1857 = vunpack.c.0.s8 %v1856
        %v1858 = vlaneseq
        %v1859 = vshrl.u32 %v1858, 7
        %v1860 = vsub.s32 %v1857, %v1859
        %v1861 = vrot.slane %v1854, %v1860
        %v1862 = vcombine.low %v1836, %v1837
        %v1864 = vunpack.c.l.s4 1983009808
        %v1865 = vunpack.c.0.s8 %v1864
        %v1866 = vlaneseq
        %v1867 = vshrl.u32 %v1866, 7
        %v1868 = vsub.s32 %v1865, %v1867
        %v1869 = vrot.slane %v1862, %v1868
        %v1870 = vcombine.low %v1845, %v1853
        %v1871 = vcombine.high %v1845, %v1853
        %v1873 = vunpack.c.l.s4 1934713408
        %v1874 = vunpack.c.0.s8 %v1873
        %v1875 = vlaneseq
        %v1876 = vshrl.u32 %v1875, 7
        %v1877 = vsub.s32 %v1874, %v1876
        %v1878 = vrot.slane %v1870, %v1877
        %v1880 = vunpack.c.l.s4 1934713408
        %v1881 = vunpack.c.0.s8 %v1880
        %v1882 = vlaneseq
        %v1883 = vshrl.u32 %v1882, 7
        %v1884 = vsub.s32 %v1881, %v1883
        %v1885 = vrot.slane %v1871, %v1884
        %v1886 = vcombine.low %v1861, %v1869
        %v1887 = vcombine.high %v1861, %v1869
        %v1889 = vunpack.c.l.s4 1934713408
        %v1890 = vunpack.c.0.s8 %v1889
        %v1891 = vlaneseq
        %v1892 = vshrl.u32 %v1891, 7
        %v1893 = vsub.s32 %v1890, %v1892
        %v1894 = vrot.slane %v1886, %v1893
        %v1896 = vunpack.c.l.s4 1934713408
        %v1897 = vunpack.c.0.s8 %v1896
        %v1898 = vlaneseq
        %v1899 = vshrl.u32 %v1898, 7
        %v1900 = vsub.s32 %v1897, %v1899
        %v1901 = vrot.slane %v1887, %v1900
        %v1902 = vcombine.low %v1878, %v1894
        %v1903 = vcombine.high %v1878, %v1894
        %v1904 = vcombine.low %v1885, %v1901
        %v1905 = vcombine.high %v1885, %v1901
        %1907 = vrot.lane.b32.xlu0 %v1903, 8
        %v1908 = vpop.permute.xlu0 %1907
        %1911 = vrot.lane.b32.xlu0 %v1904, 16
        %v1912 = vpop.permute.xlu0 %1911
        %1915 = vrot.lane.b32.xlu0 %v1905, 24
        %v1916 = vpop.permute.xlu0 %1915
        %v1918 = vsel %vm1348, %v1902, %v1908
        %vm1919 = vcmask 130048
        %v1920 = vsel %vm1919, %v1918, %v1912
        %vm1921 = vcmask 195584
        %v1922 = vsel %vm1921, %v1920, %v1916
        %v1923 = vpack.c.bf16 %v1922, %v1922
        %v1924 = vld [vmem:[#allocation9] sm:$0xf]
        %v1925 = vld [vmem:[#allocation9 + $0x4] sm:$0xf]
        %v1926 = vld [vmem:[#allocation9 + $0x8] sm:$0xf]
        %v1927 = vld [vmem:[#allocation9 + $0xc] sm:$0xf]
        %v1928 = vld [vmem:[%s9] sm:$0x1]
        %v1930 = vlaneseq
        %v1931 = vshrl.u32 %v1930, 7
        %v1932 = vsub.s32 0, %v1931
        %v1933 = vrot.slane %v1928, %v1932
        %v1939 = vunpack.c.l.b16 %v1924
        %v1940 = vunpack.c.l.b16 %v1925
        %v1941 = vunpack.c.l.b16 %v1926
        %v1942 = vunpack.c.l.b16 %v1927
        %v1943 = vpack.c.b16 %v1940, %v1939
        %v1944 = vpack.c.b16 %v1942, %v1941
        %v1948 = vsel %vm1143, %v1923, 0
        %1950 = vmatprep.subr.bf16.mxu0 0
        %1951 = vmatpush1.bf16.msra.mxu0 0
        %1952 = vmatprep.subr.bf16.mxu0 0
        %1953 = vmatpush1.bf16.msra.mxu0 0
        %1954 = vmatprep.subr.bf16.mxu0 0
        %1955 = vmatpush1.bf16.msra.mxu0 0
        %1956 = vmatprep.subr.bf16.mxu0 0
        %1957 = vmatpush1.bf16.msra.mxu0 0
        %1958 = vmatprep.subr.bf16.mxu0 0
        %1959 = vmatpush1.bf16.msra.mxu0 0
        %1960 = vmatprep.subr.bf16.mxu0 0
        %1961 = vmatpush1.bf16.msra.mxu0 0
        %1962 = vmatprep.subr.bf16.mxu0 0
        %1963 = vmatpush1.bf16.msra.mxu0 %v1944
        %1964 = vmatprep.subr.bf16.mxu0 0
        %1965 = vmatpush1.bf16.msra.mxu0 %v1943
        %1966 = vmatprep.subr.bf16.mxu0 0
        %1967 = vmatpush2.bf16.msra.mxu0 0
        %1968 = vmatprep.subr.bf16.mxu0 0
        %1969 = vmatpush2.bf16.msra.mxu0 0
        %1970 = vmatprep.subr.bf16.mxu0 0
        %1971 = vmatpush2.bf16.msra.mxu0 0
        %1972 = vmatprep.subr.bf16.mxu0 0
        %1973 = vmatpush2.bf16.msra.mxu0 0
        %1974 = vmatprep.subr.bf16.mxu0 0
        %1975 = vmatpush2.bf16.msra.mxu0 0
        %1976 = vmatprep.subr.bf16.mxu0 0
        %1977 = vmatpush2.bf16.msra.mxu0 0
        %1978 = vmatprep.subr.bf16.mxu0 0
        %1979 = vmatpush2.bf16.msra.mxu0 0
        %1980 = vmatprep.subr.bf16.mxu0 0
        %1981 = vmatpush2.bf16.msra.mxu0 0
        %1982 = vmatprep.mubr.bf16.mxu0 0
        %1983 = vmatmul.mubr.bf16.gmra.mxu0 %v1948
        %v1984 = vpop.f32.mrf.mxu0
        %v1985 = vadd.f32 %v1933, %v1984
        %v1986 = vpop.f32.mrf.mxu0
        %v1987 = vpop.f32.mrf.mxu0
        %v1988 = vpop.f32.mrf.mxu0
        %1989 = vdwg.mxu0
        %v1990 = vadd.f32 %v1985, %v1119
        %v1991 = vld [vmem:[%s10] sm:$0x1]
        %v1992 = vld [vmem:[%s11] sm:$0x1]
        %v1993 = vsel %vm1143, %v1990, 0.0
        %1994 = vadd.xlane.f32.xlu0 %v1993
        %v1995 = vpop.xlane.xlu0 %1994
        %v1996 = vrcp.pop 32.0
        %v1997 = vmul.f32 %v1995, %v1996
        %v1998 = vsub.f32 %v1990, %v1997
        %v1999 = vmul.f32 %v1998, %v1998
        %v2000 = vsel %vm1143, %v1999, 0.0
        %2001 = vadd.xlane.f32.xlu0 %v2000
        %v2002 = vpop.xlane.xlu0 %2001
        %v2003 = vmul.f32 %v2002, %v1996
        %v2004 = vadd.f32 %v2003, 1e-12
        %v2005 = vrsqrt.pop %v2004
        %v2006 = vmul.f32 %v1998, %v2005
        %v2008 = vlaneseq
        %v2009 = vshrl.u32 %v2008, 7
        %v2010 = vsub.s32 0, %v2009
        %v2011 = vrot.slane %v1991, %v2010
        %v2013 = vmul.f32 %v2006, %v2011
        %v2015 = vlaneseq
        %v2016 = vshrl.u32 %v2015, 7
        %v2017 = vsub.s32 0, %v2016
        %v2018 = vrot.slane %v1992, %v2017
        %v2020 = vadd.f32 %v2013, %v2018
        %v2021 = vpack.c.bf16 %v2020, %v2020
        %v2022 = vld [vmem:[#allocation10] sm:$0xf]
        %v2023 = vld [vmem:[#allocation10 + $0x4] sm:$0xf]
        %v2024 = vld [vmem:[#allocation10 + $0x8] sm:$0xf]
        %v2025 = vld [vmem:[#allocation10 + $0xc] sm:$0xf]
        %v2026 = vld [vmem:[%s13] sm:$0x1]
        %v2028 = vlaneseq
        %v2029 = vshrl.u32 %v2028, 7
        %v2030 = vsub.s32 0, %v2029
        %v2031 = vrot.slane %v2026, %v2030
        %v2037 = vunpack.c.l.b16 %v2022
        %v2038 = vunpack.c.l.b16 %v2023
        %v2039 = vunpack.c.l.b16 %v2024
        %v2040 = vunpack.c.l.b16 %v2025
        %v2041 = vpack.c.b16 %v2038, %v2037
        %v2042 = vpack.c.b16 %v2040, %v2039
        %v2046 = vsel %vm1143, %v2021, 0
        %2048 = vmatprep.subr.bf16.mxu0 0
        %2049 = vmatpush1.bf16.msra.mxu0 0
        %2050 = vmatprep.subr.bf16.mxu0 0
        %2051 = vmatpush1.bf16.msra.mxu0 0
        %2052 = vmatprep.subr.bf16.mxu0 0
        %2053 = vmatpush1.bf16.msra.mxu0 0
        %2054 = vmatprep.subr.bf16.mxu0 0
        %2055 = vmatpush1.bf16.msra.mxu0 0
        %2056 = vmatprep.subr.bf16.mxu0 0
        %2057 = vmatpush1.bf16.msra.mxu0 0
        %2058 = vmatprep.subr.bf16.mxu0 0
        %2059 = vmatpush1.bf16.msra.mxu0 0
        %2060 = vmatprep.subr.bf16.mxu0 0
        %2061 = vmatpush1.bf16.msra.mxu0 %v2042
        %2062 = vmatprep.subr.bf16.mxu0 0
        %2063 = vmatpush1.bf16.msra.mxu0 %v2041
        %2064 = vmatprep.subr.bf16.mxu0 0
        %2065 = vmatpush2.bf16.msra.mxu0 0
        %2066 = vmatprep.subr.bf16.mxu0 0
        %2067 = vmatpush2.bf16.msra.mxu0 0
        %2068 = vmatprep.subr.bf16.mxu0 0
        %2069 = vmatpush2.bf16.msra.mxu0 0
        %2070 = vmatprep.subr.bf16.mxu0 0
        %2071 = vmatpush2.bf16.msra.mxu0 0
        %2072 = vmatprep.subr.bf16.mxu0 0
        %2073 = vmatpush2.bf16.msra.mxu0 0
        %2074 = vmatprep.subr.bf16.mxu0 0
        %2075 = vmatpush2.bf16.msra.mxu0 0
        %2076 = vmatprep.subr.bf16.mxu0 0
        %2077 = vmatpush2.bf16.msra.mxu0 0
        %2078 = vmatprep.subr.bf16.mxu0 0
        %2079 = vmatpush2.bf16.msra.mxu0 0
        %2080 = vmatprep.mubr.bf16.mxu0 0
        %2081 = vmatmul.mubr.bf16.gmra.mxu0 %v2046
        %v2082 = vpop.f32.mrf.mxu0
        %v2083 = vadd.f32 %v2031, %v2082
        %v2084 = vpop.f32.mrf.mxu0
        %v2085 = vpop.f32.mrf.mxu0
        %v2086 = vpop.f32.mrf.mxu0
        %2087 = vdwg.mxu0
        %v2088 = vmul.f32 %v2083, 0.5
        %v2089 = vrcp.pop 1.4142135
        %v2090 = vmul.f32 %v2083, %v2089
        %v2091 = verf.f32.pop %v2090
        %v2092 = vadd.f32 %v2091, 1.0
        %v2093 = vmul.f32 %v2088, %v2092
        %v2094 = vpack.c.bf16 %v2093, %v2093
        %v2095 = vld [vmem:[%s14] sm:$0xf]
        %v2096 = vld [vmem:[%s14 + $0x4] sm:$0xf]
        %v2097 = vld [vmem:[%s14 + $0x8] sm:$0xf]
        %v2098 = vld [vmem:[%s14 + $0xc] sm:$0xf]
        %v2099 = vld [vmem:[%s14 + $0x10] sm:$0xf]
        %v2100 = vld [vmem:[%s14 + $0x14] sm:$0xf]
        %v2101 = vld [vmem:[%s14 + $0x18] sm:$0xf]
        %v2102 = vld [vmem:[%s14 + $0x1c] sm:$0xf]
        %v2103 = vld [vmem:[%s15] sm:$0x1]
        %v2105 = vlaneseq
        %v2106 = vshrl.u32 %v2105, 7
        %v2107 = vsub.s32 0, %v2106
        %v2108 = vrot.slane %v2103, %v2107
        %v2118 = vunpack.c.l.b16 %v2095
        %v2119 = vunpack.c.l.b16 %v2096
        %v2120 = vunpack.c.l.b16 %v2097
        %v2121 = vunpack.c.l.b16 %v2098
        %v2122 = vunpack.c.l.b16 %v2099
        %v2123 = vunpack.c.l.b16 %v2100
        %v2124 = vunpack.c.l.b16 %v2101
        %v2125 = vunpack.c.l.b16 %v2102
        %v2126 = vpack.c.b16 %v2119, %v2118
        %v2127 = vpack.c.b16 %v2121, %v2120
        %v2128 = vpack.c.b16 %v2123, %v2122
        %v2129 = vpack.c.b16 %v2125, %v2124
        %vm2134 = vcmask 523264
        %v2136 = vsel %vm2134, %v2094, 0
        %2138 = vmatprep.subr.bf16.mxu0 0
        %2139 = vmatpush1.bf16.msra.mxu0 0
        %2140 = vmatprep.subr.bf16.mxu0 0
        %2141 = vmatpush1.bf16.msra.mxu0 0
        %2142 = vmatprep.subr.bf16.mxu0 0
        %2143 = vmatpush1.bf16.msra.mxu0 0
        %2144 = vmatprep.subr.bf16.mxu0 0
        %2145 = vmatpush1.bf16.msra.mxu0 0
        %2146 = vmatprep.subr.bf16.mxu0 0
        %2147 = vmatpush1.bf16.msra.mxu0 %v2129
        %2148 = vmatprep.subr.bf16.mxu0 0
        %2149 = vmatpush1.bf16.msra.mxu0 %v2128
        %2150 = vmatprep.subr.bf16.mxu0 0
        %2151 = vmatpush1.bf16.msra.mxu0 %v2127
        %2152 = vmatprep.subr.bf16.mxu0 0
        %2153 = vmatpush1.bf16.msra.mxu0 %v2126
        %2154 = vmatprep.subr.bf16.mxu0 0
        %2155 = vmatpush2.bf16.msra.mxu0 0
        %2156 = vmatprep.subr.bf16.mxu0 0
        %2157 = vmatpush2.bf16.msra.mxu0 0
        %2158 = vmatprep.subr.bf16.mxu0 0
        %2159 = vmatpush2.bf16.msra.mxu0 0
        %2160 = vmatprep.subr.bf16.mxu0 0
        %2161 = vmatpush2.bf16.msra.mxu0 0
        %2162 = vmatprep.subr.bf16.mxu0 0
        %2163 = vmatpush2.bf16.msra.mxu0 0
        %2164 = vmatprep.subr.bf16.mxu0 0
        %2165 = vmatpush2.bf16.msra.mxu0 0
        %2166 = vmatprep.subr.bf16.mxu0 0
        %2167 = vmatpush2.bf16.msra.mxu0 0
        %2168 = vmatprep.subr.bf16.mxu0 0
        %2169 = vmatpush2.bf16.msra.mxu0 0
        %2170 = vmatprep.mubr.bf16.mxu0 0
        %2171 = vmatmul.mubr.bf16.gmra.mxu0 %v2136
        %v2172 = vpop.f32.mrf.mxu0
        %v2173 = vadd.f32 %v2108, %v2172
        %v2174 = vpop.f32.mrf.mxu0
        %v2175 = vpop.f32.mrf.mxu0
        %v2176 = vpop.f32.mrf.mxu0
        %2177 = vdwg.mxu0
        %v2178 = vadd.f32 %v2173, %v2020
        %v2179 = vld [vmem:[%s16] sm:$0x1]
        %v2180 = vld [vmem:[%s17] sm:$0x1]
        %v2181 = vsel %vm1143, %v2178, 0.0
        %2182 = vadd.xlane.f32.xlu0 %v2181
        %v2183 = vpop.xlane.xlu0 %2182
        %v2184 = vmul.f32 %v2183, %v1996
        %v2185 = vsub.f32 %v2178, %v2184
        %v2186 = vmul.f32 %v2185, %v2185
        %v2187 = vsel %vm1143, %v2186, 0.0
        %2188 = vadd.xlane.f32.xlu0 %v2187
        %v2189 = vpop.xlane.xlu0 %2188
        %v2190 = vmul.f32 %v2189, %v1996
        %v2191 = vadd.f32 %v2190, 1e-12
        %v2192 = vrsqrt.pop %v2191
        %v2193 = vmul.f32 %v2185, %v2192
        %v2195 = vlaneseq
        %v2196 = vshrl.u32 %v2195, 7
        %v2197 = vsub.s32 0, %v2196
        %v2198 = vrot.slane %v2179, %v2197
        %v2200 = vmul.f32 %v2193, %v2198
        %v2202 = vlaneseq
        %v2203 = vshrl.u32 %v2202, 7
        %v2204 = vsub.s32 0, %v2203
        %v2205 = vrot.slane %v2180, %v2204
        %v2207 = vadd.f32 %v2200, %v2205
        %v2208 = vpack.c.bf16 %v2207, %v2207
        %vm2209 = vcmask 257024
        %2210 = vst.msk [vmem:[%s667] sm:$0xf] %vm2209, %v2208
        %s2211 = sand.u32 %s449, 1
        %s2212 = scalar_lea.sflag [#allocation6], %s2211
        %s2213 = sand.u32 %s449, 1
        %s2214 = smul.addr %s2213, 4
        %s2215 = scalar_lea.vmem [#allocation12], %s2214
        // Predicated region
        $region113: #{tpu_custom_call.1} parent=91 // pred_check
          %p2216 = pneg %p459
        $region114: #{tpu_custom_call.1} parent=91 // pred_check_branch
          %2218 = sbr.rel (%p2216) target = $region116
        $region115: #{tpu_custom_call.1} parent=91 // pred_region
          %s2220 = ssub.s32 64, 64
          %2221 = vsyncadd %s2212, %s2220
          %s2222 = sadd.s32 %s44, %s43
          %s2223 = smul.addr %s2222, 64
          %s2224 = scalar_lea.hbm %s18, %s2223
          %s2226 = sshll.u32 %s2215, 4
          %s2227 = int_to_ptr.vmem [resolvable:$true] %s2226
          %2229 = dma.vmem_to_hbm [thread:$0]  %s2227, 64, %s2224, %s2212
        $region116: #{tpu_custom_call.1} parent=91 // pred_fallthru
          _
      $region92: #{tpu_custom_call.1} parent=5 // pred_fallthru
        _
      %p2230 = scmp.le.s32.totalorder 2, %s34
      // Predicated region
      $region117: #{tpu_custom_call.1} parent=5 // pred_check
        %p2231 = pneg %p2230
      $region118: #{tpu_custom_call.1} parent=5 // pred_check_branch
        %2233 = sbr.rel (%p2231) target = $region120
      $region119: #{tpu_custom_call.1} parent=5 // pred_region
        %s2234 = ssub.s32 %s34, 2
        // Predicated region
        $region121: #{tpu_custom_call.1} parent=119 // pred_check
          %p2235 = pneg %p465
        $region122: #{tpu_custom_call.1} parent=119 // pred_check_branch
          %2237 = sbr.rel (%p2235) target = $region124
        $region123: #{tpu_custom_call.1} parent=119 // pred_region
          %s2238 = sand.u32 %s450, 1
          %s2239 = scalar_lea.sflag [#allocation6], %s2238
          %s2240 = sand.u32 %s450, 1
          %s2241 = smul.addr %s2240, 4
          %s2242 = scalar_lea.vmem [#allocation12], %s2241
          %2243 = dma.done %s2239, 64
        $region124: #{tpu_custom_call.1} parent=119 // pred_fallthru
          _
      $region120: #{tpu_custom_call.1} parent=5 // pred_fallthru
        _
    $region6: #{tpu_custom_call.1} parent=1 // loop_footer
      %s38 = sadd.s32 1, %s34
    $region7: #{tpu_custom_call.1} parent=1 // loop_footer_branch
      %33 = sbr.rel target = $region3
    $region8: #{tpu_custom_call.1} parent=1 // loop_exit
      _
    %2244 = vsyncpa [#allocation5], 1
    %s2245 = scalar_lea.sflag [#allocation5], 1
    %2246 = vsyncpa %s2245, 1
    %2247 = vsyncpa [#allocation8], 1
    %s2248 = scalar_lea.sflag [#allocation8], 1
    %2249 = vsyncpa %s2248, 1
    %2250 = vsyncpa [#allocation11], 1
    %2251 = vsyncpa [#allocation6], 1
    %s2252 = scalar_lea.sflag [#allocation6], 1
    %2253 = vsyncpa %s2252, 1

</llo_original>
